<compile_context>
chip_gen: v5e
topology: v5e:2x2
jax: 0.10.0
libtpu: 0.0.40
codegen_flags: <defaults>
</compile_context>

<pallas_src>
import functools

import jax
import jax.numpy as jnp
from jax.experimental import pallas as pl
from jax.experimental.pallas import tpu as pltpu


_VMEM_LIMIT = 8 * 1024 * 1024  # whole VAE working set is far below this


def _compiler_params():
    return pltpu.CompilerParams(vmem_limit_bytes=_VMEM_LIMIT)


# ----------------------------------------------------------------------------
# Pallas kernels
# ----------------------------------------------------------------------------
def _gemm_bias_act_kernel(w_ref, p_ref, b_ref, o_ref, *, activation):
    """o = act(w @ p + b), transposed (lane-dense) orientation.

    w:[N,K], p:[K,M], b:[N,1], o:[N,M]  (M = B*Ho*Wo is the lane axis).
    MXU runs on bf16 inputs with f32 accumulation.
    """
    acc = jnp.dot(w_ref[...].astype(jnp.bfloat16),
                  p_ref[...].astype(jnp.bfloat16),
                  preferred_element_type=jnp.float32)
    acc = acc + b_ref[...]                      # [N,1] broadcast over lanes
    if activation == "relu":
        acc = jnp.maximum(acc, 0.0)
    elif activation == "tanh":
        acc = jnp.tanh(acc)
    o_ref[...] = acc


def _head_kernel(flat_ref, mu_w_ref, mu_b_ref, lv_w_ref, lv_b_ref,
                 eps_ref, cemb_ref, pre_wz_ref, pre_wc_ref, pre_b_ref,
                 mu_ref, lv_ref, pre_ref):
    """Fused: mu linear, logvar linear, reparameterization, pre_decoder+ReLU.

    The class-embedding contribution is added via a split weight
    (cat([z, emb]) @ W == z @ W[:L] + emb @ W[L:]), avoiding an in-kernel concat.
    """
    flat = flat_ref[...].astype(jnp.bfloat16)
    mu = jnp.dot(flat, mu_w_ref[...].astype(jnp.bfloat16),
                 preferred_element_type=jnp.float32) + mu_b_ref[...]
    lv = jnp.dot(flat, lv_w_ref[...].astype(jnp.bfloat16),
                 preferred_element_type=jnp.float32) + lv_b_ref[...]
    z = mu + eps_ref[...] * jnp.exp(0.5 * lv)   # reparameterization trick
    pre = (jnp.dot(z.astype(jnp.bfloat16), pre_wz_ref[...].astype(jnp.bfloat16),
                   preferred_element_type=jnp.float32)
           + jnp.dot(cemb_ref[...].astype(jnp.bfloat16),
                     pre_wc_ref[...].astype(jnp.bfloat16),
                     preferred_element_type=jnp.float32)
           + pre_b_ref[...])
    mu_ref[...] = mu
    lv_ref[...] = lv
    pre_ref[...] = jnp.maximum(pre, 0.0)


# ----------------------------------------------------------------------------
# Pallas wrappers (no grid -> single whole-array VMEM blocks, no padding)
# ----------------------------------------------------------------------------
def gemm_bias_act_T(w_t, patches_t, b, activation):
    """act(w_t @ patches_t + b). w_t:[N,K], patches_t:[K,M], b:[N] -> [N,M]."""
    N, _ = w_t.shape
    M = patches_t.shape[1]
    kernel = functools.partial(_gemm_bias_act_kernel, activation=activation)
    return pl.pallas_call(
        kernel,
        out_shape=jax.ShapeDtypeStruct((N, M), jnp.float32),
        compiler_params=_compiler_params(),
    )(w_t, patches_t, b.reshape(N, 1).astype(jnp.float32))


def latent_head_pallas(flat, mu_w, mu_b, lv_w, lv_b, eps, cemb, pre_w, pre_b,
                       latent_dim):
    B, T = flat.shape
    L = latent_dim
    pre_wz = pre_w[:L]          # [L, T]
    pre_wc = pre_w[L:]          # [E, T]
    out_shapes = (jax.ShapeDtypeStruct((B, L), jnp.float32),   # mu
                  jax.ShapeDtypeStruct((B, L), jnp.float32),   # logvar
                  jax.ShapeDtypeStruct((B, T), jnp.float32))   # pre-decoder act
    return pl.pallas_call(
        _head_kernel,
        out_shape=out_shapes,
        compiler_params=_compiler_params(),
    )(flat, mu_w, mu_b.reshape(1, L), lv_w, lv_b.reshape(1, L),
      eps, cemb, pre_wz, pre_wc, pre_b.reshape(1, T))


# ----------------------------------------------------------------------------
# Conv / ConvTranspose as (transposed) im2col + Pallas GEMM
# ----------------------------------------------------------------------------
def _im2col_T(xp, k, stride):
    """xp: padded NHWC [B,Hp,Wp,C] -> patches^T [k*k*C, B*Ho*Wo].

    Row index ordering: (di, dj, c); column ordering: (b, ho, wo).
    """
    B, Hp, Wp, C = xp.shape
    Ho = (Hp - k) // stride + 1
    Wo = (Wp - k) // stride + 1
    cols = []
    for di in range(k):
        for dj in range(k):
            cols.append(xp[:, di:di + stride * Ho:stride,
                              dj:dj + stride * Wo:stride, :])
    patches = jnp.stack(cols, axis=0)                     # [k*k, B, Ho, Wo, C]
    patches = jnp.transpose(patches, (0, 4, 1, 2, 3))     # [k*k, C, B, Ho, Wo]
    return patches.reshape(k * k * C, B * Ho * Wo), Ho, Wo


def conv2d_pallas(x_nhwc, w_oihw, b, stride, padding, activation):
    """PyTorch-equivalent Conv2d. w_oihw: [Cout,Cin,kH,kW]."""
    B = x_nhwc.shape[0]
    Cout, Cin, k, _ = w_oihw.shape
    xp = jnp.pad(x_nhwc, ((0, 0), (padding, padding), (padding, padding), (0, 0)))
    patches_t, Ho, Wo = _im2col_T(xp, k, stride)
    # w_t[cout, (di*k+dj)*Cin + cin] = w[cout, cin, di, dj]
    w_t = jnp.transpose(w_oihw, (0, 2, 3, 1)).reshape(Cout, k * k * Cin)
    out_t = gemm_bias_act_T(w_t, patches_t, b, activation)   # [Cout, B*Ho*Wo]
    out = out_t.reshape(Cout, B, Ho, Wo)
    return jnp.transpose(out, (1, 2, 3, 0))                   # NHWC


def _dilate2d(x, s):
    B, H, W, C = x.shape
    out = jnp.zeros((B, (H - 1) * s + 1, (W - 1) * s + 1, C), x.dtype)
    return out.at[:, ::s, ::s, :].set(x)


def conv_transpose2d_pallas(x_nhwc, w_iohw, b, stride, padding, output_padding,
                            activation):
    """PyTorch-equivalent ConvTranspose2d. w_iohw: [Cin,Cout,kH,kW].

    Realized as zero-dilation + pad + stride-1 conv with the spatially flipped,
    in/out-transposed kernel, then lowered to the same transposed GEMM.
    """
    B = x_nhwc.shape[0]
    Cin, Cout, k, _ = w_iohw.shape
    xd = _dilate2d(x_nhwc, stride)
    lo = k - 1 - padding
    hi = k - 1 - padding + output_padding
    xp = jnp.pad(xd, ((0, 0), (lo, hi), (lo, hi), (0, 0)))
    patches_t, Ho, Wo = _im2col_T(xp, k, 1)
    w_flip = w_iohw[:, :, ::-1, ::-1]
    # w_t[cout, (di*k+dj)*Cin + cin] = w_flip[cin, cout, di, dj]
    w_t = jnp.transpose(w_flip, (1, 2, 3, 0)).reshape(Cout, k * k * Cin)
    out_t = gemm_bias_act_T(w_t, patches_t, b, activation)   # [Cout, B*Ho*Wo]
    out = out_t.reshape(Cout, B, Ho, Wo)
    return jnp.transpose(out, (1, 2, 3, 0))                   # NHWC


# ----------------------------------------------------------------------------
# VAE forward
# ----------------------------------------------------------------------------
def vae_forward(params, x_nchw, y, eps, *, hidden_dim, latent_dim):
    h0, h1, h2 = hidden_dim
    B = x_nchw.shape[0]

    # encoder
    x = jnp.transpose(x_nchw, (0, 2, 3, 1))                                  # NCHW -> NHWC
    x = conv2d_pallas(x, params["enc1_w"], params["enc1_b"], 2, 1, "relu")   # 14x14
    x = conv2d_pallas(x, params["enc2_w"], params["enc2_b"], 2, 1, "relu")   # 7x7
    x = conv2d_pallas(x, params["enc3_w"], params["enc3_b"], 2, 1, "relu")   # 4x4
    # match torch.nn.Flatten over NCHW (C,H,W order)
    flat = jnp.transpose(x, (0, 3, 1, 2)).reshape(B, -1)                     # [B, h2*16]

    # class embedding lookup (pure gather, kept in plain JAX)
    # TODO(synk): nn.Embedding gather has no clean Pallas equivalent at this
    # size; done with jnp.take outside the kernel.
    class_emb = jnp.take(params["emb"], y, axis=0)

    # fused: mu linear + logvar linear + reparameterization + pre_decoder+ReLU
    # TODO(synk): torch.randn_like is a fresh random draw each call; here eps
    # is a deterministic kernel input for reproducibility.
    mu, logvar, pre = latent_head_pallas(
        flat, params["mu_w"], params["mu_b"], params["lv_w"], params["lv_b"],
        eps, class_emb, params["pre_w"], params["pre_b"], latent_dim)

    d = pre.reshape(B, h2, 4, 4)                                  # NCHW view (as torch)
    d = jnp.transpose(d, (0, 2, 3, 1))                            # -> NHWC
    d = conv_transpose2d_pallas(d, params["dec1_w"], params["dec1_b"], 2, 1, 0, "relu")  # 7x7
    d = conv_transpose2d_pallas(d, params["dec2_w"], params["dec2_b"], 2, 1, 1, "relu")  # 14x14
    d = conv_transpose2d_pallas(d, params["dec3_w"], params["dec3_b"], 2, 1, 1, "tanh")  # 28x28
    reconstructed = jnp.transpose(d, (0, 3, 1, 2))                # NHWC -> NCHW

    return reconstructed, mu, logvar


# ----------------------------------------------------------------------------
# Deterministic synthetic parameters (shapes match the PyTorch module)
# ----------------------------------------------------------------------------
def init_params(key, hidden_dim, latent_dim, class_emb_dim, num_classes):
    h0, h1, h2 = hidden_dim
    target = h2 * 16
    ks = jax.random.split(key, 19)

    def nrm(k, shape, scale=0.05):
        return scale * jax.random.normal(k, shape, jnp.float32)

    return {
        # encoder convs: PyTorch weight layout [Cout, Cin, kH, kW]
        "enc1_w": nrm(ks[0], (h0, 1, 3, 3)),  "enc1_b": nrm(ks[1], (h0,)),
        "enc2_w": nrm(ks[2], (h1, h0, 3, 3)), "enc2_b": nrm(ks[3], (h1,)),
        "enc3_w": nrm(ks[4], (h2, h1, 3, 3)), "enc3_b": nrm(ks[5], (h2,)),
        # linears stored as [in, out] (= torch weight transposed)
        "mu_w": nrm(ks[6], (target, latent_dim)),  "mu_b": nrm(ks[7], (latent_dim,)),
        "lv_w": nrm(ks[8], (target, latent_dim)),  "lv_b": nrm(ks[9], (latent_dim,)),
        "emb": nrm(ks[10], (num_classes, class_emb_dim), 1.0),
        "pre_w": nrm(ks[11], (latent_dim + class_emb_dim, target)),
        "pre_b": nrm(ks[12], (target,)),
        # decoder conv-transposes: PyTorch weight layout [Cin, Cout, kH, kW]
        "dec1_w": nrm(ks[13], (h2, h1, 3, 3)), "dec1_b": nrm(ks[14], (h1,)),
        "dec2_w": nrm(ks[15], (h1, h0, 3, 3)), "dec2_b": nrm(ks[16], (h0,)),
        "dec3_w": nrm(ks[17], (h0, 1, 3, 3)),  "dec3_b": nrm(ks[18], (1,)),
    }


if __name__ == "__main__":
    HIDDEN = (4, 8, 16)   # hidden_dim -> target_dim = 16*16 = 256
    LATENT = 8
    CEMB = 4
    NCLS = 10
    B = 2

    key = jax.random.PRNGKey(0)
    kp, kx, ky, ke = jax.random.split(key, 4)

    params = init_params(kp, HIDDEN, LATENT, CEMB, NCLS)
    x = jax.random.normal(kx, (B, 1, 28, 28), jnp.float32)
    y = jax.random.randint(ky, (B,), 0, NCLS)
    eps = jax.random.normal(ke, (B, LATENT), jnp.float32)

    fwd = jax.jit(functools.partial(vae_forward, hidden_dim=HIDDEN,
                                    latent_dim=LATENT))
    reconstructed, mu, logvar = fwd(params, x, y, eps)
    jax.block_until_ready((reconstructed, mu, logvar))

    assert reconstructed.shape == (B, 1, 28, 28)
    assert mu.shape == (B, LATENT) and logvar.shape == (B, LATENT)
    assert bool(jnp.all(jnp.isfinite(reconstructed)))
    assert bool(jnp.all(jnp.isfinite(mu))) and bool(jnp.all(jnp.isfinite(logvar)))
    print("KERNEL_OK")
</pallas_src>

<mosaic_0001>
module attributes {stable_mosaic.version = 11 : i64} {
  func.func @_gemm_bias_act_kernel(%arg0: memref<4x9xf32, #tpu.memory_space<vmem>>, %arg1: memref<9x392xf32, #tpu.memory_space<vmem>>, %arg2: memref<4x1xf32, #tpu.memory_space<vmem>>, %arg3: memref<4x392xf32, #tpu.memory_space<vmem>>) attributes {dimension_semantics = [], scalar_prefetch = 0 : i64, scratch_operands = 0 : i64, tpu.core_type = #tpu.core_type<tc>} {
    %c0 = arith.constant 0 : index
    %c0_0 = arith.constant 0 : index
    %0 = vector.load %arg0[%c0, %c0_0] : memref<4x9xf32, #tpu.memory_space<vmem>>, vector<4x9xf32>
    %1 = arith.truncf %0 : vector<4x9xf32> to vector<4x9xbf16>
    %c0_1 = arith.constant 0 : index
    %c0_2 = arith.constant 0 : index
    %2 = vector.load %arg1[%c0_1, %c0_2] : memref<9x392xf32, #tpu.memory_space<vmem>>, vector<9x392xf32>
    %3 = arith.truncf %2 : vector<9x392xf32> to vector<9x392xbf16>
    %cst = arith.constant dense<0.000000e+00> : vector<4x392xf32>
    %4 = tpu.matmul %1, %3, %cst {dimension_numbers = #tpu.dot_dimension_numbers<[1], [0], [0], [1], [0, 0, 1, 1], [], []>} : vector<4x9xbf16>, vector<9x392xbf16>, vector<4x392xf32> -> vector<4x392xf32>
    %c0_3 = arith.constant 0 : index
    %c0_4 = arith.constant 0 : index
    %5 = vector.load %arg2[%c0_3, %c0_4] : memref<4x1xf32, #tpu.memory_space<vmem>>, vector<4x1xf32>
    %6 = vector.broadcast %5 : vector<4x1xf32> to vector<4x392xf32>
    %7 = arith.addf %4, %6 : vector<4x392xf32>
    %cst_5 = arith.constant 0.000000e+00 : f32
    %8 = vector.broadcast %cst_5 : f32 to vector<4x392xf32>
    %9 = arith.maximumf %7, %8 : vector<4x392xf32>
    %c0_6 = arith.constant 0 : index
    %c0_7 = arith.constant 0 : index
    %10 = vector.load %arg3[%c0_6, %c0_7] : memref<4x392xf32, #tpu.memory_space<vmem>>, vector<4x392xf32>
    tpu.vector_store %arg3[%c0_6, %c0_7], %9 {strides = array<i32>} : memref<4x392xf32, #tpu.memory_space<vmem>>, vector<4x392xf32>,
    return
  }
}

module attributes {stable_mosaic.version = 11 : i64} {
  func.func @_gemm_bias_act_kernel(%arg0: memref<8x36xf32, #tpu.memory_space<vmem>>, %arg1: memref<36x98xf32, #tpu.memory_space<vmem>>, %arg2: memref<8x1xf32, #tpu.memory_space<vmem>>, %arg3: memref<8x98xf32, #tpu.memory_space<vmem>>) attributes {dimension_semantics = [], scalar_prefetch = 0 : i64, scratch_operands = 0 : i64, tpu.core_type = #tpu.core_type<tc>} {
    %c0 = arith.constant 0 : index
    %c0_0 = arith.constant 0 : index
    %0 = vector.load %arg0[%c0, %c0_0] : memref<8x36xf32, #tpu.memory_space<vmem>>, vector<8x36xf32>
    %1 = arith.truncf %0 : vector<8x36xf32> to vector<8x36xbf16>
    %c0_1 = arith.constant 0 : index
    %c0_2 = arith.constant 0 : index
    %2 = vector.load %arg1[%c0_1, %c0_2] : memref<36x98xf32, #tpu.memory_space<vmem>>, vector<36x98xf32>
    %3 = arith.truncf %2 : vector<36x98xf32> to vector<36x98xbf16>
    %cst = arith.constant dense<0.000000e+00> : vector<8x98xf32>
    %4 = tpu.matmul %1, %3, %cst {dimension_numbers = #tpu.dot_dimension_numbers<[1], [0], [0], [1], [0, 0, 1, 1], [], []>} : vector<8x36xbf16>, vector<36x98xbf16>, vector<8x98xf32> -> vector<8x98xf32>
    %c0_3 = arith.constant 0 : index
    %c0_4 = arith.constant 0 : index
    %5 = vector.load %arg2[%c0_3, %c0_4] : memref<8x1xf32, #tpu.memory_space<vmem>>, vector<8x1xf32>
    %6 = vector.broadcast %5 : vector<8x1xf32> to vector<8x98xf32>
    %7 = arith.addf %4, %6 : vector<8x98xf32>
    %cst_5 = arith.constant 0.000000e+00 : f32
    %8 = vector.broadcast %cst_5 : f32 to vector<8x98xf32>
    %9 = arith.maximumf %7, %8 : vector<8x98xf32>
    %c0_6 = arith.constant 0 : index
    %c0_7 = arith.constant 0 : index
    %10 = vector.load %arg3[%c0_6, %c0_7] : memref<8x98xf32, #tpu.memory_space<vmem>>, vector<8x98xf32>
    tpu.vector_store %arg3[%c0_6, %c0_7], %9 {strides = array<i32>} : memref<8x98xf32, #tpu.memory_space<vmem>>, vector<8x98xf32>,
    return
  }
}

module attributes {stable_mosaic.version = 11 : i64} {
  func.func @_gemm_bias_act_kernel(%arg0: memref<16x72xf32, #tpu.memory_space<vmem>>, %arg1: memref<72x32xf32, #tpu.memory_space<vmem>>, %arg2: memref<16x1xf32, #tpu.memory_space<vmem>>, %arg3: memref<16x32xf32, #tpu.memory_space<vmem>>) attributes {dimension_semantics = [], scalar_prefetch = 0 : i64, scratch_operands = 0 : i64, tpu.core_type = #tpu.core_type<tc>} {
    %c0 = arith.constant 0 : index
    %c0_0 = arith.constant 0 : index
    %0 = vector.load %arg0[%c0, %c0_0] : memref<16x72xf32, #tpu.memory_space<vmem>>, vector<16x72xf32>
    %1 = arith.truncf %0 : vector<16x72xf32> to vector<16x72xbf16>
    %c0_1 = arith.constant 0 : index
    %c0_2 = arith.constant 0 : index
    %2 = vector.load %arg1[%c0_1, %c0_2] : memref<72x32xf32, #tpu.memory_space<vmem>>, vector<72x32xf32>
    %3 = arith.truncf %2 : vector<72x32xf32> to vector<72x32xbf16>
    %cst = arith.constant dense<0.000000e+00> : vector<16x32xf32>
    %4 = tpu.matmul %1, %3, %cst {dimension_numbers = #tpu.dot_dimension_numbers<[1], [0], [0], [1], [0, 0, 1, 1], [], []>} : vector<16x72xbf16>, vector<72x32xbf16>, vector<16x32xf32> -> vector<16x32xf32>
    %c0_3 = arith.constant 0 : index
    %c0_4 = arith.constant 0 : index
    %5 = vector.load %arg2[%c0_3, %c0_4] : memref<16x1xf32, #tpu.memory_space<vmem>>, vector<16x1xf32>
    %6 = vector.broadcast %5 : vector<16x1xf32> to vector<16x32xf32>
    %7 = arith.addf %4, %6 : vector<16x32xf32>
    %cst_5 = arith.constant 0.000000e+00 : f32
    %8 = vector.broadcast %cst_5 : f32 to vector<16x32xf32>
    %9 = arith.maximumf %7, %8 : vector<16x32xf32>
    %c0_6 = arith.constant 0 : index
    %c0_7 = arith.constant 0 : index
    %10 = vector.load %arg3[%c0_6, %c0_7] : memref<16x32xf32, #tpu.memory_space<vmem>>, vector<16x32xf32>
    tpu.vector_store %arg3[%c0_6, %c0_7], %9 {strides = array<i32>} : memref<16x32xf32, #tpu.memory_space<vmem>>, vector<16x32xf32>,
    return
  }
}

module attributes {stable_mosaic.version = 11 : i64} {
  func.func @_head_kernel(%arg0: memref<2x256xf32, #tpu.memory_space<vmem>>, %arg1: memref<256x8xf32, #tpu.memory_space<vmem>>, %arg2: memref<1x8xf32, #tpu.memory_space<vmem>>, %arg3: memref<256x8xf32, #tpu.memory_space<vmem>>, %arg4: memref<1x8xf32, #tpu.memory_space<vmem>>, %arg5: memref<2x8xf32, #tpu.memory_space<vmem>>, %arg6: memref<2x4xf32, #tpu.memory_space<vmem>>, %arg7: memref<8x256xf32, #tpu.memory_space<vmem>>, %arg8: memref<4x256xf32, #tpu.memory_space<vmem>>, %arg9: memref<1x256xf32, #tpu.memory_space<vmem>>, %arg10: memref<2x8xf32, #tpu.memory_space<vmem>>, %arg11: memref<2x8xf32, #tpu.memory_space<vmem>>, %arg12: memref<2x256xf32, #tpu.memory_space<vmem>>) attributes {dimension_semantics = [], scalar_prefetch = 0 : i64, scratch_operands = 0 : i64, tpu.core_type = #tpu.core_type<tc>} {
    %c0 = arith.constant 0 : index
    %c0_0 = arith.constant 0 : index
    %0 = vector.load %arg0[%c0, %c0_0] : memref<2x256xf32, #tpu.memory_space<vmem>>, vector<2x256xf32>
    %1 = arith.truncf %0 : vector<2x256xf32> to vector<2x256xbf16>
    %c0_1 = arith.constant 0 : index
    %c0_2 = arith.constant 0 : index
    %2 = vector.load %arg1[%c0_1, %c0_2] : memref<256x8xf32, #tpu.memory_space<vmem>>, vector<256x8xf32>
    %3 = arith.truncf %2 : vector<256x8xf32> to vector<256x8xbf16>
    %cst = arith.constant dense<0.000000e+00> : vector<2x8xf32>
    %4 = tpu.matmul %1, %3, %cst {dimension_numbers = #tpu.dot_dimension_numbers<[1], [0], [0], [1], [0, 0, 1, 1], [], []>} : vector<2x256xbf16>, vector<256x8xbf16>, vector<2x8xf32> -> vector<2x8xf32>
    %c0_3 = arith.constant 0 : index
    %c0_4 = arith.constant 0 : index
    %5 = vector.load %arg2[%c0_3, %c0_4] : memref<1x8xf32, #tpu.memory_space<vmem>>, vector<1x8xf32>
    %6 = vector.broadcast %5 : vector<1x8xf32> to vector<2x8xf32>
    %7 = arith.addf %4, %6 : vector<2x8xf32>
    %c0_5 = arith.constant 0 : index
    %c0_6 = arith.constant 0 : index
    %8 = vector.load %arg3[%c0_5, %c0_6] : memref<256x8xf32, #tpu.memory_space<vmem>>, vector<256x8xf32>
    %9 = arith.truncf %8 : vector<256x8xf32> to vector<256x8xbf16>
    %cst_7 = arith.constant dense<0.000000e+00> : vector<2x8xf32>
    %10 = tpu.matmul %1, %9, %cst_7 {dimension_numbers = #tpu.dot_dimension_numbers<[1], [0], [0], [1], [0, 0, 1, 1], [], []>} : vector<2x256xbf16>, vector<256x8xbf16>, vector<2x8xf32> -> vector<2x8xf32>
    %c0_8 = arith.constant 0 : index
    %c0_9 = arith.constant 0 : index
    %11 = vector.load %arg4[%c0_8, %c0_9] : memref<1x8xf32, #tpu.memory_space<vmem>>, vector<1x8xf32>
    %12 = vector.broadcast %11 : vector<1x8xf32> to vector<2x8xf32>
    %13 = arith.addf %10, %12 : vector<2x8xf32>
    %c0_10 = arith.constant 0 : index
    %c0_11 = arith.constant 0 : index
    %14 = vector.load %arg5[%c0_10, %c0_11] : memref<2x8xf32, #tpu.memory_space<vmem>>, vector<2x8xf32>
    %cst_12 = arith.constant 5.000000e-01 : f32
    %15 = vector.broadcast %cst_12 : f32 to vector<2x8xf32>
    %16 = arith.mulf %15, %13 : vector<2x8xf32>
    %17 = math.exp %16 : vector<2x8xf32>
    %18 = arith.mulf %14, %17 : vector<2x8xf32>
    %19 = arith.addf %7, %18 : vector<2x8xf32>
    %20 = arith.truncf %19 : vector<2x8xf32> to vector<2x8xbf16>
    %c0_13 = arith.constant 0 : index
    %c0_14 = arith.constant 0 : index
    %21 = vector.load %arg7[%c0_13, %c0_14] : memref<8x256xf32, #tpu.memory_space<vmem>>, vector<8x256xf32>
    %22 = arith.truncf %21 : vector<8x256xf32> to vector<8x256xbf16>
    %cst_15 = arith.constant dense<0.000000e+00> : vector<2x256xf32>
    %23 = tpu.matmul %20, %22, %cst_15 {dimension_numbers = #tpu.dot_dimension_numbers<[1], [0], [0], [1], [0, 0, 1, 1], [], []>} : vector<2x8xbf16>, vector<8x256xbf16>, vector<2x256xf32> -> vector<2x256xf32>
    %c0_16 = arith.constant 0 : index
    %c0_17 = arith.constant 0 : index
    %24 = vector.load %arg6[%c0_16, %c0_17] : memref<2x4xf32, #tpu.memory_space<vmem>>, vector<2x4xf32>
    %25 = arith.truncf %24 : vector<2x4xf32> to vector<2x4xbf16>
    %c0_18 = arith.constant 0 : index
    %c0_19 = arith.constant 0 : index
    %26 = vector.load %arg8[%c0_18, %c0_19] : memref<4x256xf32, #tpu.memory_space<vmem>>, vector<4x256xf32>
    %27 = arith.truncf %26 : vector<4x256xf32> to vector<4x256xbf16>
    %cst_20 = arith.constant dense<0.000000e+00> : vector<2x256xf32>
    %28 = tpu.matmul %25, %27, %cst_20 {dimension_numbers = #tpu.dot_dimension_numbers<[1], [0], [0], [1], [0, 0, 1, 1], [], []>} : vector<2x4xbf16>, vector<4x256xbf16>, vector<2x256xf32> -> vector<2x256xf32>
    %29 = arith.addf %23, %28 : vector<2x256xf32>
    %c0_21 = arith.constant 0 : index
    %c0_22 = arith.constant 0 : index
    %30 = vector.load %arg9[%c0_21, %c0_22] : memref<1x256xf32, #tpu.memory_space<vmem>>, vector<1x256xf32>
    %31 = vector.broadcast %30 : vector<1x256xf32> to vector<2x256xf32>
    %32 = arith.addf %29, %31 : vector<2x256xf32>
    %c0_23 = arith.constant 0 : index
    %c0_24 = arith.constant 0 : index
    %33 = vector.load %arg10[%c0_23, %c0_24] : memref<2x8xf32, #tpu.memory_space<vmem>>, vector<2x8xf32>
    tpu.vector_store %arg10[%c0_23, %c0_24], %7 {strides = array<i32>} : memref<2x8xf32, #tpu.memory_space<vmem>>, vector<2x8xf32>,
    %c0_25 = arith.constant 0 : index
    %c0_26 = arith.constant 0 : index
    %34 = vector.load %arg11[%c0_25, %c0_26] : memref<2x8xf32, #tpu.memory_space<vmem>>, vector<2x8xf32>
    tpu.vector_store %arg11[%c0_25, %c0_26], %13 {strides = array<i32>} : memref<2x8xf32, #tpu.memory_space<vmem>>, vector<2x8xf32>,
    %cst_27 = arith.constant 0.000000e+00 : f32
    %35 = vector.broadcast %cst_27 : f32 to vector<2x256xf32>
    %36 = arith.maximumf %32, %35 : vector<2x256xf32>
    %c0_28 = arith.constant 0 : index
    %c0_29 = arith.constant 0 : index
    %37 = vector.load %arg12[%c0_28, %c0_29] : memref<2x256xf32, #tpu.memory_space<vmem>>, vector<2x256xf32>
    tpu.vector_store %arg12[%c0_28, %c0_29], %36 {strides = array<i32>} : memref<2x256xf32, #tpu.memory_space<vmem>>, vector<2x256xf32>,
    return
  }
}

module attributes {stable_mosaic.version = 11 : i64} {
  func.func @_gemm_bias_act_kernel(%arg0: memref<8x144xf32, #tpu.memory_space<vmem>>, %arg1: memref<144x98xf32, #tpu.memory_space<vmem>>, %arg2: memref<8x1xf32, #tpu.memory_space<vmem>>, %arg3: memref<8x98xf32, #tpu.memory_space<vmem>>) attributes {dimension_semantics = [], scalar_prefetch = 0 : i64, scratch_operands = 0 : i64, tpu.core_type = #tpu.core_type<tc>} {
    %c0 = arith.constant 0 : index
    %c0_0 = arith.constant 0 : index
    %0 = vector.load %arg0[%c0, %c0_0] : memref<8x144xf32, #tpu.memory_space<vmem>>, vector<8x144xf32>
    %1 = arith.truncf %0 : vector<8x144xf32> to vector<8x144xbf16>
    %c0_1 = arith.constant 0 : index
    %c0_2 = arith.constant 0 : index
    %2 = vector.load %arg1[%c0_1, %c0_2] : memref<144x98xf32, #tpu.memory_space<vmem>>, vector<144x98xf32>
    %3 = arith.truncf %2 : vector<144x98xf32> to vector<144x98xbf16>
    %cst = arith.constant dense<0.000000e+00> : vector<8x98xf32>
    %4 = tpu.matmul %1, %3, %cst {dimension_numbers = #tpu.dot_dimension_numbers<[1], [0], [0], [1], [0, 0, 1, 1], [], []>} : vector<8x144xbf16>, vector<144x98xbf16>, vector<8x98xf32> -> vector<8x98xf32>
    %c0_3 = arith.constant 0 : index
    %c0_4 = arith.constant 0 : index
    %5 = vector.load %arg2[%c0_3, %c0_4] : memref<8x1xf32, #tpu.memory_space<vmem>>, vector<8x1xf32>
    %6 = vector.broadcast %5 : vector<8x1xf32> to vector<8x98xf32>
    %7 = arith.addf %4, %6 : vector<8x98xf32>
    %cst_5 = arith.constant 0.000000e+00 : f32
    %8 = vector.broadcast %cst_5 : f32 to vector<8x98xf32>
    %9 = arith.maximumf %7, %8 : vector<8x98xf32>
    %c0_6 = arith.constant 0 : index
    %c0_7 = arith.constant 0 : index
    %10 = vector.load %arg3[%c0_6, %c0_7] : memref<8x98xf32, #tpu.memory_space<vmem>>, vector<8x98xf32>
    tpu.vector_store %arg3[%c0_6, %c0_7], %9 {strides = array<i32>} : memref<8x98xf32, #tpu.memory_space<vmem>>, vector<8x98xf32>,
    return
  }
}

module attributes {stable_mosaic.version = 11 : i64} {
  func.func @_gemm_bias_act_kernel(%arg0: memref<4x72xf32, #tpu.memory_space<vmem>>, %arg1: memref<72x392xf32, #tpu.memory_space<vmem>>, %arg2: memref<4x1xf32, #tpu.memory_space<vmem>>, %arg3: memref<4x392xf32, #tpu.memory_space<vmem>>) attributes {dimension_semantics = [], scalar_prefetch = 0 : i64, scratch_operands = 0 : i64, tpu.core_type = #tpu.core_type<tc>} {
    %c0 = arith.constant 0 : index
    %c0_0 = arith.constant 0 : index
    %0 = vector.load %arg0[%c0, %c0_0] : memref<4x72xf32, #tpu.memory_space<vmem>>, vector<4x72xf32>
    %1 = arith.truncf %0 : vector<4x72xf32> to vector<4x72xbf16>
    %c0_1 = arith.constant 0 : index
    %c0_2 = arith.constant 0 : index
    %2 = vector.load %arg1[%c0_1, %c0_2] : memref<72x392xf32, #tpu.memory_space<vmem>>, vector<72x392xf32>
    %3 = arith.truncf %2 : vector<72x392xf32> to vector<72x392xbf16>
    %cst = arith.constant dense<0.000000e+00> : vector<4x392xf32>
    %4 = tpu.matmul %1, %3, %cst {dimension_numbers = #tpu.dot_dimension_numbers<[1], [0], [0], [1], [0, 0, 1, 1], [], []>} : vector<4x72xbf16>, vector<72x392xbf16>, vector<4x392xf32> -> vector<4x392xf32>
    %c0_3 = arith.constant 0 : index
    %c0_4 = arith.constant 0 : index
    %5 = vector.load %arg2[%c0_3, %c0_4] : memref<4x1xf32, #tpu.memory_space<vmem>>, vector<4x1xf32>
    %6 = vector.broadcast %5 : vector<4x1xf32> to vector<4x392xf32>
    %7 = arith.addf %4, %6 : vector<4x392xf32>
    %cst_5 = arith.constant 0.000000e+00 : f32
    %8 = vector.broadcast %cst_5 : f32 to vector<4x392xf32>
    %9 = arith.maximumf %7, %8 : vector<4x392xf32>
    %c0_6 = arith.constant 0 : index
    %c0_7 = arith.constant 0 : index
    %10 = vector.load %arg3[%c0_6, %c0_7] : memref<4x392xf32, #tpu.memory_space<vmem>>, vector<4x392xf32>
    tpu.vector_store %arg3[%c0_6, %c0_7], %9 {strides = array<i32>} : memref<4x392xf32, #tpu.memory_space<vmem>>, vector<4x392xf32>,
    return
  }
}

module attributes {stable_mosaic.version = 11 : i64} {
  func.func @_gemm_bias_act_kernel(%arg0: memref<1x36xf32, #tpu.memory_space<vmem>>, %arg1: memref<36x1568xf32, #tpu.memory_space<vmem>>, %arg2: memref<1x1xf32, #tpu.memory_space<vmem>>, %arg3: memref<1x1568xf32, #tpu.memory_space<vmem>>) attributes {dimension_semantics = [], scalar_prefetch = 0 : i64, scratch_operands = 0 : i64, tpu.core_type = #tpu.core_type<tc>} {
    %c0 = arith.constant 0 : index
    %c0_0 = arith.constant 0 : index
    %0 = vector.load %arg0[%c0, %c0_0] : memref<1x36xf32, #tpu.memory_space<vmem>>, vector<1x36xf32>
    %1 = arith.truncf %0 : vector<1x36xf32> to vector<1x36xbf16>
    %c0_1 = arith.constant 0 : index
    %c0_2 = arith.constant 0 : index
    %2 = vector.load %arg1[%c0_1, %c0_2] : memref<36x1568xf32, #tpu.memory_space<vmem>>, vector<36x1568xf32>
    %3 = arith.truncf %2 : vector<36x1568xf32> to vector<36x1568xbf16>
    %cst = arith.constant dense<0.000000e+00> : vector<1x1568xf32>
    %4 = tpu.matmul %1, %3, %cst {dimension_numbers = #tpu.dot_dimension_numbers<[1], [0], [0], [1], [0, 0, 1, 1], [], []>} : vector<1x36xbf16>, vector<36x1568xbf16>, vector<1x1568xf32> -> vector<1x1568xf32>
    %c0_3 = arith.constant 0 : index
    %c0_4 = arith.constant 0 : index
    %5 = vector.load %arg2[%c0_3, %c0_4] : memref<1x1xf32, #tpu.memory_space<vmem>>, vector<1x1xf32>
    %6 = vector.broadcast %5 : vector<1x1xf32> to vector<1x1568xf32>
    %7 = arith.addf %4, %6 : vector<1x1568xf32>
    %8 = math.tanh %7 : vector<1x1568xf32>
    %c0_5 = arith.constant 0 : index
    %c0_6 = arith.constant 0 : index
    %9 = vector.load %arg3[%c0_5, %c0_6] : memref<1x1568xf32, #tpu.memory_space<vmem>>, vector<1x1568xf32>
    tpu.vector_store %arg3[%c0_5, %c0_6], %8 {strides = array<i32>} : memref<1x1568xf32, #tpu.memory_space<vmem>>, vector<1x1568xf32>,
    return
  }
}

</mosaic_0001>

<llo_original>
// kernel: vae_forward.7
$region0: #{vae_forward.7}
  #allocation0 [shape = 'u32[]', space=smem, size = 0x4, offset = 0x4, fixed_abs, tag = 'smem constant byte address 0x4 - core index']
  #allocation1 [shape = 'u32[72,128]{1,0:T(1,128)}', space=vmem, size = 0x9000, scoped, tag = 'internal scratch']
  %s0 = inlined_call_operand.vmem [shape: f32[4,9], index: 0, kind: input, shape index: {}]
  %s1 = inlined_call_operand.vmem [shape: f32[9,392], index: 1, kind: input, shape index: {}]
  %s2 = inlined_call_operand.vmem [shape: f32[4,1], index: 2, kind: input, shape index: {}]
  %s3 = inlined_call_operand.vmem [shape: f32[4,392], index: 3, kind: output, shape index: {}]
  %s4 = sld [smem:[#allocation0]]
  $region22: #{vae_forward.7} parent=0
    _
  %s6 = ssub.s32 1, %s4
  %s7 = scalar_select 0, %s6, %s4
  // Predicated region
  $region2: #{vae_forward.7} parent=0 // pred_check
    _
  $region3: #{vae_forward.7} parent=0 // pred_check_branch
    %9 = sbr.rel (0) target = $region5
  $region4: #{vae_forward.7} parent=0 // pred_region
    _
  $region5: #{vae_forward.7} parent=0 // pred_fallthru
    _
  // Predicated region
  $region6: #{vae_forward.7} parent=0 // pred_check
    _
  $region7: #{vae_forward.7} parent=0 // pred_check_branch
    %11 = sbr.rel (0) target = $region9
  $region8: #{vae_forward.7} parent=0 // pred_region
    _
  $region9: #{vae_forward.7} parent=0 // pred_fallthru
    _
  // Predicated region
  $region10: #{vae_forward.7} parent=0 // pred_check
    _
  $region11: #{vae_forward.7} parent=0 // pred_check_branch
    %13 = sbr.rel (0) target = $region13
  $region12: #{vae_forward.7} parent=0 // pred_region
    _
  $region13: #{vae_forward.7} parent=0 // pred_fallthru
    _
  %v15 = vld [vmem:[%s0] sm:$0xf]
  %v16 = vpack.c.bf16 %v15, %v15
  %v17 = vld [vmem:[%s1] sm:$0xff]
  %v18 = vld [vmem:[%s1 + $0x8] sm:$0xff]
  %v19 = vld [vmem:[%s1 + $0x10] sm:$0xff]
  %v20 = vld [vmem:[%s1 + $0x18] sm:$0xff]
  %v21 = vld [vmem:[%s1 + $0x20] sm:$0x1]
  %v22 = vld [vmem:[%s1 + $0x28] sm:$0x1]
  %v23 = vld [vmem:[%s1 + $0x30] sm:$0x1]
  %v24 = vld [vmem:[%s1 + $0x38] sm:$0x1]
  %v25 = vpack.c.bf16 %v21, %v17
  %v26 = vpack.c.bf16 %v22, %v18
  %v27 = vpack.c.bf16 %v23, %v19
  %v28 = vpack.c.bf16 %v24, %v20
  %v29 = vld [vmem:[%s2] sm:$0xf]
  %31 = vset.pattern.permute.xlu0 0
  %32 = vperm.xlu0 %31, %v29
  %v33 = vpop.permute.xlu0 %32
  %vm35 = vcmask 72704
  %v37 = vsel %vm35, %v16, 0
  %vm39 = vcmask 1043456
  %vm40 = vcmask 1044480
  %v41 = vsel %vm39, 4294967295, 65535
  %v42 = vsel %vm40, %v41, 0
  %v44 = vand.u32 %v25, %v42
  %v47 = vand.u32 %v26, %v42
  %v50 = vand.u32 %v27, %v42
  %v53 = vand.u32 %v28, %v42
  %55 = vmatpush.bf16.msra.mxu0 0
  %56 = vmatpush.bf16.msra.mxu0 0
  %57 = vmatpush.bf16.msra.mxu0 0
  %58 = vmatpush.bf16.msra.mxu0 0
  %59 = vmatpush.bf16.msra.mxu0 0
  %60 = vmatpush.bf16.msra.mxu0 0
  %61 = vmatpush.bf16.msra.mxu0 0
  %62 = vmatpush.bf16.msra.mxu0 %v44
  %63 = vmatmul.bf16.gmra.mxu0 %v37
  %v64 = vpop.f32.mrf.mxu0
  %v65 = vadd.f32 %v33, %v64
  %v66 = vpop.f32.mrf.mxu0
  %67 = vdwg.mxu0
  %68 = vmatpush.bf16.msra.mxu0 0
  %69 = vmatpush.bf16.msra.mxu0 0
  %70 = vmatpush.bf16.msra.mxu0 0
  %71 = vmatpush.bf16.msra.mxu0 0
  %72 = vmatpush.bf16.msra.mxu0 0
  %73 = vmatpush.bf16.msra.mxu0 0
  %74 = vmatpush.bf16.msra.mxu0 0
  %75 = vmatpush.bf16.msra.mxu0 %v47
  %76 = vmatmul.bf16.gmra.mxu0 %v37
  %v77 = vpop.f32.mrf.mxu0
  %v78 = vadd.f32 %v33, %v77
  %v79 = vpop.f32.mrf.mxu0
  %80 = vdwg.mxu0
  %81 = vmatpush.bf16.msra.mxu0 0
  %82 = vmatpush.bf16.msra.mxu0 0
  %83 = vmatpush.bf16.msra.mxu0 0
  %84 = vmatpush.bf16.msra.mxu0 0
  %85 = vmatpush.bf16.msra.mxu0 0
  %86 = vmatpush.bf16.msra.mxu0 0
  %87 = vmatpush.bf16.msra.mxu0 0
  %88 = vmatpush.bf16.msra.mxu0 %v50
  %89 = vmatmul.bf16.gmra.mxu0 %v37
  %v90 = vpop.f32.mrf.mxu0
  %v91 = vadd.f32 %v33, %v90
  %v92 = vpop.f32.mrf.mxu0
  %93 = vdwg.mxu0
  %94 = vmatpush.bf16.msra.mxu0 0
  %95 = vmatpush.bf16.msra.mxu0 0
  %96 = vmatpush.bf16.msra.mxu0 0
  %97 = vmatpush.bf16.msra.mxu0 0
  %98 = vmatpush.bf16.msra.mxu0 0
  %99 = vmatpush.bf16.msra.mxu0 0
  %100 = vmatpush.bf16.msra.mxu0 0
  %101 = vmatpush.bf16.msra.mxu0 %v53
  %102 = vmatmul.bf16.gmra.mxu0 %v37
  %v103 = vpop.f32.mrf.mxu0
  %v104 = vadd.f32 %v33, %v103
  %v105 = vpop.f32.mrf.mxu0
  %106 = vdwg.mxu0
  %v107 = vmax.f32 %v65, 0.0
  %v108 = vmax.f32 %v78, 0.0
  %v109 = vmax.f32 %v91, 0.0
  %v110 = vmax.f32 %v104, 0.0
  %v115 = vrot.slane %v108, 4
  %v116 = vrot.slane %v110, 4
  %v117 = vsel %vm39, %v107, %v115
  %v118 = vsel %vm39, %v109, %v116
  %121 = vst [vmem:[%s3] sm:$0xff] %v117
  %vm122 = vcmask 64516
  %vm123 = vmor %vm122, %vm39
  %124 = vst.msk [vmem:[%s3 + $0x8] sm:$0xff] %vm123, %v118
  // Predicated region
  $region14: #{vae_forward.7} parent=0 // pred_check
    _
  $region15: #{vae_forward.7} parent=0 // pred_check_branch
    %126 = sbr.rel (0) target = $region17
  $region16: #{vae_forward.7} parent=0 // pred_region
    _
  $region17: #{vae_forward.7} parent=0 // pred_fallthru
    _
  // Predicated region
  $region18: #{vae_forward.7} parent=0 // pred_check
    _
  $region19: #{vae_forward.7} parent=0 // pred_check_branch
    %128 = sbr.rel (0) target = $region21
  $region20: #{vae_forward.7} parent=0 // pred_region
    _
  $region21: #{vae_forward.7} parent=0 // pred_fallthru
    _

// kernel: vae_forward.8
$region0: #{vae_forward.8}
  #allocation0 [shape = 'u32[]', space=smem, size = 0x4, offset = 0x4, fixed_abs, tag = 'smem constant byte address 0x4 - core index']
  #allocation1 [shape = 'u32[72,128]{1,0:T(1,128)}', space=vmem, size = 0x9000, scoped, tag = 'internal scratch']
  %s0 = inlined_call_operand.vmem [shape: f32[8,36], index: 0, kind: input, shape index: {}]
  %s1 = inlined_call_operand.vmem [shape: f32[36,98], index: 1, kind: input, shape index: {}]
  %s2 = inlined_call_operand.vmem [shape: f32[8,1], index: 2, kind: input, shape index: {}]
  %s3 = inlined_call_operand.vmem [shape: f32[8,98], index: 3, kind: output, shape index: {}]
  %s4 = sld [smem:[#allocation0]]
  $region22: #{vae_forward.8} parent=0
    _
  %s6 = ssub.s32 1, %s4
  %s7 = scalar_select 0, %s6, %s4
  // Predicated region
  $region2: #{vae_forward.8} parent=0 // pred_check
    _
  $region3: #{vae_forward.8} parent=0 // pred_check_branch
    %9 = sbr.rel (0) target = $region5
  $region4: #{vae_forward.8} parent=0 // pred_region
    _
  $region5: #{vae_forward.8} parent=0 // pred_fallthru
    _
  // Predicated region
  $region6: #{vae_forward.8} parent=0 // pred_check
    _
  $region7: #{vae_forward.8} parent=0 // pred_check_branch
    %11 = sbr.rel (0) target = $region9
  $region8: #{vae_forward.8} parent=0 // pred_region
    _
  $region9: #{vae_forward.8} parent=0 // pred_fallthru
    _
  // Predicated region
  $region10: #{vae_forward.8} parent=0 // pred_check
    _
  $region11: #{vae_forward.8} parent=0 // pred_check_branch
    %13 = sbr.rel (0) target = $region13
  $region12: #{vae_forward.8} parent=0 // pred_region
    _
  $region13: #{vae_forward.8} parent=0 // pred_fallthru
    _
  %v15 = vld [vmem:[%s0] sm:$0xff]
  %v16 = vpack.c.bf16 %v15, %v15
  %v17 = vld [vmem:[%s1] sm:$0xff]
  %v18 = vld [vmem:[%s1 + $0x8] sm:$0xff]
  %v19 = vld [vmem:[%s1 + $0x10] sm:$0xff]
  %v20 = vld [vmem:[%s1 + $0x18] sm:$0xff]
  %v21 = vld [vmem:[%s1 + $0x20] sm:$0xf]
  %v22 = vpack.c.bf16 %v18, %v17
  %v23 = vpack.c.bf16 %v20, %v19
  %v24 = vpack.c.bf16 %v21, %v21
  %v25 = vld [vmem:[%s2] sm:$0xff]
  %27 = vset.pattern.permute.xlu0 0
  %28 = vperm.xlu0 %27, %v25
  %v29 = vpop.permute.xlu0 %28
  %vm31 = vcmask 293888
  %v33 = vsel %vm31, %v16, 0
  %vm35 = vcmask 1041408
  %v37 = vsel %vm35, %v24, 0
  %39 = vmatpush.bf16.msra.mxu0 0
  %40 = vmatpush.bf16.msra.mxu0 0
  %41 = vmatpush.bf16.msra.mxu0 0
  %42 = vmatpush.bf16.msra.mxu0 0
  %43 = vmatpush.bf16.msra.mxu0 0
  %44 = vmatpush.bf16.msra.mxu0 %v37
  %45 = vmatpush.bf16.msra.mxu0 %v23
  %46 = vmatpush.bf16.msra.mxu0 %v22
  %47 = vmatmul.bf16.gmra.mxu0 %v33
  %v48 = vpop.f32.mrf.mxu0
  %v49 = vadd.f32 %v29, %v48
  %v50 = vpop.f32.mrf.mxu0
  %51 = vdwg.mxu0
  %v52 = vmax.f32 %v49, 0.0
  %vm53 = vcmask 801792
  %54 = vst.msk [vmem:[%s3] sm:$0xff] %vm53, %v52
  // Predicated region
  $region14: #{vae_forward.8} parent=0 // pred_check
    _
  $region15: #{vae_forward.8} parent=0 // pred_check_branch
    %56 = sbr.rel (0) target = $region17
  $region16: #{vae_forward.8} parent=0 // pred_region
    _
  $region17: #{vae_forward.8} parent=0 // pred_fallthru
    _
  // Predicated region
  $region18: #{vae_forward.8} parent=0 // pred_check
    _
  $region19: #{vae_forward.8} parent=0 // pred_check_branch
    %58 = sbr.rel (0) target = $region21
  $region20: #{vae_forward.8} parent=0 // pred_region
    _
  $region21: #{vae_forward.8} parent=0 // pred_fallthru
    _

// kernel: vae_forward.9
$region0: #{vae_forward.9}
  #allocation0 [shape = 'u32[]', space=smem, size = 0x4, offset = 0x4, fixed_abs, tag = 'smem constant byte address 0x4 - core index']
  #allocation1 [shape = 'u32[72,128]{1,0:T(1,128)}', space=vmem, size = 0x9000, scoped, tag = 'internal scratch']
  %s0 = inlined_call_operand.vmem [shape: f32[16,72], index: 0, kind: input, shape index: {}]
  %s1 = inlined_call_operand.vmem [shape: f32[72,32], index: 1, kind: input, shape index: {}]
  %s2 = inlined_call_operand.vmem [shape: f32[16,1], index: 2, kind: input, shape index: {}]
  %s3 = inlined_call_operand.vmem [shape: f32[16,32], index: 3, kind: output, shape index: {}]
  %s4 = sld [smem:[#allocation0]]
  $region22: #{vae_forward.9} parent=0
    _
  %s6 = ssub.s32 1, %s4
  %s7 = scalar_select 0, %s6, %s4
  // Predicated region
  $region2: #{vae_forward.9} parent=0 // pred_check
    _
  $region3: #{vae_forward.9} parent=0 // pred_check_branch
    %9 = sbr.rel (0) target = $region5
  $region4: #{vae_forward.9} parent=0 // pred_region
    _
  $region5: #{vae_forward.9} parent=0 // pred_fallthru
    _
  // Predicated region
  $region6: #{vae_forward.9} parent=0 // pred_check
    _
  $region7: #{vae_forward.9} parent=0 // pred_check_branch
    %11 = sbr.rel (0) target = $region9
  $region8: #{vae_forward.9} parent=0 // pred_region
    _
  $region9: #{vae_forward.9} parent=0 // pred_fallthru
    _
  // Predicated region
  $region10: #{vae_forward.9} parent=0 // pred_check
    _
  $region11: #{vae_forward.9} parent=0 // pred_check_branch
    %13 = sbr.rel (0) target = $region13
  $region12: #{vae_forward.9} parent=0 // pred_region
    _
  $region13: #{vae_forward.9} parent=0 // pred_fallthru
    _
  %v15 = vld [vmem:[%s0] sm:$0xff]
  %v16 = vld [vmem:[%s0 + $0x8] sm:$0xff]
  %v17 = vpack.c.bf16 %v16, %v15
  %v18 = vld [vmem:[%s1] sm:$0xff]
  %v19 = vld [vmem:[%s1 + $0x8] sm:$0xff]
  %v20 = vld [vmem:[%s1 + $0x10] sm:$0xff]
  %v21 = vld [vmem:[%s1 + $0x18] sm:$0xff]
  %v22 = vld [vmem:[%s1 + $0x20] sm:$0xff]
  %v23 = vld [vmem:[%s1 + $0x28] sm:$0xff]
  %v24 = vld [vmem:[%s1 + $0x30] sm:$0xff]
  %v25 = vld [vmem:[%s1 + $0x38] sm:$0xff]
  %v26 = vld [vmem:[%s1 + $0x40] sm:$0xff]
  %v27 = vpack.c.bf16 %v19, %v18
  %v28 = vpack.c.bf16 %v21, %v20
  %v29 = vpack.c.bf16 %v23, %v22
  %v30 = vpack.c.bf16 %v25, %v24
  %v31 = vpack.c.bf16 %v26, %v26
  %v32 = vld [vmem:[%s2] sm:$0xff]
  %v33 = vld [vmem:[%s2 + $0x8] sm:$0xff]
  %35 = vset.pattern.permute.xlu0 0
  %36 = vperm.xlu0 %35, %v32
  %v37 = vpop.permute.xlu0 %36
  %40 = vset.pattern.permute.xlu0 0
  %41 = vperm.xlu0 %40, %v33
  %v42 = vpop.permute.xlu0 %41
  %vm44 = vcmask 588800
  %v46 = vsel %vm44, %v17, 0
  %vm48 = vcmask 1043456
  %v50 = vsel %vm48, %v31, 0
  %52 = vmatpush.bf16.msra.mxu0 0
  %53 = vmatpush.bf16.msra.mxu0 0
  %54 = vmatpush.bf16.msra.mxu0 0
  %55 = vmatpush.bf16.msra.mxu0 %v50
  %56 = vmatpush.bf16.msra.mxu0 %v30
  %57 = vmatpush.bf16.msra.mxu0 %v29
  %58 = vmatpush.bf16.msra.mxu0 %v28
  %59 = vmatpush.bf16.msra.mxu0 %v27
  %60 = vmatmul.bf16.gmra.mxu0 %v46
  %v61 = vpop.f32.mrf.mxu0
  %v62 = vadd.f32 %v37, %v61
  %v63 = vpop.f32.mrf.mxu0
  %v64 = vadd.f32 %v42, %v63
  %65 = vdwg.mxu0
  %v66 = vmax.f32 %v62, 0.0
  %v67 = vmax.f32 %v64, 0.0
  %vm68 = vcmask 261120
  %69 = vst.msk [vmem:[%s3] sm:$0xff] %vm68, %v66
  %70 = vst.msk [vmem:[%s3 + $0x8] sm:$0xff] %vm68, %v67
  // Predicated region
  $region14: #{vae_forward.9} parent=0 // pred_check
    _
  $region15: #{vae_forward.9} parent=0 // pred_check_branch
    %72 = sbr.rel (0) target = $region17
  $region16: #{vae_forward.9} parent=0 // pred_region
    _
  $region17: #{vae_forward.9} parent=0 // pred_fallthru
    _
  // Predicated region
  $region18: #{vae_forward.9} parent=0 // pred_check
    _
  $region19: #{vae_forward.9} parent=0 // pred_check_branch
    %74 = sbr.rel (0) target = $region21
  $region20: #{vae_forward.9} parent=0 // pred_region
    _
  $region21: #{vae_forward.9} parent=0 // pred_fallthru
    _

// kernel: vae_forward.10
$region0: #{vae_forward.10}
  #allocation0 [shape = 'u32[]', space=smem, size = 0x4, offset = 0x4, fixed_abs, tag = 'smem constant byte address 0x4 - core index']
  #allocation1 [shape = 'u32[72,128]{1,0:T(1,128)}', space=vmem, size = 0x9000, scoped, tag = 'internal scratch']
  %s0 = inlined_call_operand.vmem [shape: f32[2,256], index: 0, kind: input, shape index: {}]
  %s1 = inlined_call_operand.vmem [shape: f32[256,8], index: 1, kind: input, shape index: {}]
  %s2 = inlined_call_operand.vmem [shape: f32[1,8], index: 2, kind: input, shape index: {}]
  %s3 = inlined_call_operand.vmem [shape: f32[256,8], index: 3, kind: input, shape index: {}]
  %s4 = inlined_call_operand.vmem [shape: f32[1,8], index: 4, kind: input, shape index: {}]
  %s5 = inlined_call_operand.vmem [shape: f32[2,8], index: 5, kind: input, shape index: {}]
  %s6 = inlined_call_operand.vmem [shape: f32[2,4], index: 6, kind: input, shape index: {}]
  %s7 = inlined_call_operand.vmem [shape: f32[8,256], index: 7, kind: input, shape index: {}]
  %s8 = inlined_call_operand.vmem [shape: f32[4,256], index: 8, kind: input, shape index: {}]
  %s9 = inlined_call_operand.vmem [shape: f32[1,256], index: 9, kind: input, shape index: {}]
  %s10 = inlined_call_operand.hbm [shape: f32[2,8], index: 10, kind: output, shape index: {0}]
  %s11 = inlined_call_operand.hbm [shape: f32[2,8], index: 11, kind: output, shape index: {1}]
  %s12 = inlined_call_operand.vmem [shape: f32[2,256], index: 12, kind: output, shape index: {2}]
  %13 = xla_tuple %s10, %s11, %s12
  %s14 = sld [smem:[#allocation0]]
  $region66: #{vae_forward.10} parent=0
    _
  %s16 = ssub.s32 1, %s14
  %s17 = scalar_select 0, %s16, %s14
  $region1: #{vae_forward.10} parent=0
    #allocation2 [shape = 'u8[1024]{0}', space=vmem, size = 0x400, scoped, tag = 'output window, operand 0, single buffered']
    #allocation3 [shape = 's32[1]{0}', space=sflag, size = 0x4, scoped, tag = 'scoped memory for vae_forward.10']
    #allocation4 [shape = 'u8[1024]{0}', space=vmem, size = 0x400, scoped, tag = 'output window, operand 1, single buffered']
    #allocation5 [shape = 's32[1]{0}', space=sflag, size = 0x4, scoped, tag = 'scoped memory for vae_forward.10']
    %18 = vsyncpa [#allocation3], 0
    %19 = vsyncpa [#allocation5], 0
    // Predicated region
    $region2: #{vae_forward.10} parent=1 // pred_check
      _
    $region3: #{vae_forward.10} parent=1 // pred_check_branch
      %21 = sbr.rel (0) target = $region5
    $region4: #{vae_forward.10} parent=1 // pred_region
      _
    $region5: #{vae_forward.10} parent=1 // pred_fallthru
      _
    // Predicated region
    $region6: #{vae_forward.10} parent=1 // pred_check
      _
    $region7: #{vae_forward.10} parent=1 // pred_check_branch
      %23 = sbr.rel (0) target = $region9
    $region8: #{vae_forward.10} parent=1 // pred_region
      _
    $region9: #{vae_forward.10} parent=1 // pred_fallthru
      _
    // Predicated region
    $region10: #{vae_forward.10} parent=1 // pred_check
      _
    $region11: #{vae_forward.10} parent=1 // pred_check_branch
      %25 = sbr.rel (0) target = $region13
    $region12: #{vae_forward.10} parent=1 // pred_region
      _
    $region13: #{vae_forward.10} parent=1 // pred_fallthru
      _
    // Predicated region
    $region14: #{vae_forward.10} parent=1 // pred_check
      _
    $region15: #{vae_forward.10} parent=1 // pred_check_branch
      %27 = sbr.rel (0) target = $region17
    $region16: #{vae_forward.10} parent=1 // pred_region
      _
    $region17: #{vae_forward.10} parent=1 // pred_fallthru
      _
    // Predicated region
    $region18: #{vae_forward.10} parent=1 // pred_check
      _
    $region19: #{vae_forward.10} parent=1 // pred_check_branch
      %29 = sbr.rel (0) target = $region21
    $region20: #{vae_forward.10} parent=1 // pred_region
      _
    $region21: #{vae_forward.10} parent=1 // pred_fallthru
      _
    // Predicated region
    $region22: #{vae_forward.10} parent=1 // pred_check
      _
    $region23: #{vae_forward.10} parent=1 // pred_check_branch
      %31 = sbr.rel (0) target = $region25
    $region24: #{vae_forward.10} parent=1 // pred_region
      _
    $region25: #{vae_forward.10} parent=1 // pred_fallthru
      _
    // Predicated region
    $region26: #{vae_forward.10} parent=1 // pred_check
      _
    $region27: #{vae_forward.10} parent=1 // pred_check_branch
      %33 = sbr.rel (0) target = $region29
    $region28: #{vae_forward.10} parent=1 // pred_region
      _
    $region29: #{vae_forward.10} parent=1 // pred_fallthru
      _
    // Predicated region
    $region30: #{vae_forward.10} parent=1 // pred_check
      _
    $region31: #{vae_forward.10} parent=1 // pred_check_branch
      %35 = sbr.rel (0) target = $region33
    $region32: #{vae_forward.10} parent=1 // pred_region
      _
    $region33: #{vae_forward.10} parent=1 // pred_fallthru
      _
    // Predicated region
    $region34: #{vae_forward.10} parent=1 // pred_check
      _
    $region35: #{vae_forward.10} parent=1 // pred_check_branch
      %37 = sbr.rel (0) target = $region37
    $region36: #{vae_forward.10} parent=1 // pred_region
      _
    $region37: #{vae_forward.10} parent=1 // pred_fallthru
      _
    // Predicated region
    $region38: #{vae_forward.10} parent=1 // pred_check
      _
    $region39: #{vae_forward.10} parent=1 // pred_check_branch
      %39 = sbr.rel (0) target = $region41
    $region40: #{vae_forward.10} parent=1 // pred_region
      _
    $region41: #{vae_forward.10} parent=1 // pred_fallthru
      _
    %v41 = vld [vmem:[%s0] sm:$0xf]
    %43 = vst [vmem:[#allocation1] ss:$4 sm:$0xff] %v41
    %v44 = vld.sshfl [vmem:[#allocation1] sm:$0xff pattern:$0x73625140]
    %v45 = vld.sshfl [vmem:[#allocation1 + $0x8] sm:$0xff pattern:$0x73625140]
    %v48 = vpack.c.bf16 %v44, %v44
    %v49 = vpack.c.bf16 %v45, %v45
    %v50 = vld [vmem:[%s1] sm:$0xff]
    %v51 = vld [vmem:[%s1 + $0x8] sm:$0xff]
    %v52 = vld [vmem:[%s1 + $0x10] sm:$0xff]
    %v53 = vld [vmem:[%s1 + $0x18] sm:$0xff]
    %v54 = vld [vmem:[%s1 + $0x20] sm:$0xff]
    %v55 = vld [vmem:[%s1 + $0x28] sm:$0xff]
    %v56 = vld [vmem:[%s1 + $0x30] sm:$0xff]
    %v57 = vld [vmem:[%s1 + $0x38] sm:$0xff]
    %v58 = vld [vmem:[%s1 + $0x40] sm:$0xff]
    %v59 = vld [vmem:[%s1 + $0x48] sm:$0xff]
    %v60 = vld [vmem:[%s1 + $0x50] sm:$0xff]
    %v61 = vld [vmem:[%s1 + $0x58] sm:$0xff]
    %v62 = vld [vmem:[%s1 + $0x60] sm:$0xff]
    %v63 = vld [vmem:[%s1 + $0x68] sm:$0xff]
    %v64 = vld [vmem:[%s1 + $0x70] sm:$0xff]
    %v65 = vld [vmem:[%s1 + $0x78] sm:$0xff]
    %v66 = vld [vmem:[%s1 + $0x80] sm:$0xff]
    %v67 = vld [vmem:[%s1 + $0x88] sm:$0xff]
    %v68 = vld [vmem:[%s1 + $0x90] sm:$0xff]
    %v69 = vld [vmem:[%s1 + $0x98] sm:$0xff]
    %v70 = vld [vmem:[%s1 + $0xa0] sm:$0xff]
    %v71 = vld [vmem:[%s1 + $0xa8] sm:$0xff]
    %v72 = vld [vmem:[%s1 + $0xb0] sm:$0xff]
    %v73 = vld [vmem:[%s1 + $0xb8] sm:$0xff]
    %v74 = vld [vmem:[%s1 + $0xc0] sm:$0xff]
    %v75 = vld [vmem:[%s1 + $0xc8] sm:$0xff]
    %v76 = vld [vmem:[%s1 + $0xd0] sm:$0xff]
    %v77 = vld [vmem:[%s1 + $0xd8] sm:$0xff]
    %v78 = vld [vmem:[%s1 + $0xe0] sm:$0xff]
    %v79 = vld [vmem:[%s1 + $0xe8] sm:$0xff]
    %v80 = vld [vmem:[%s1 + $0xf0] sm:$0xff]
    %v81 = vld [vmem:[%s1 + $0xf8] sm:$0xff]
    %v82 = vpack.c.bf16 %v51, %v50
    %v83 = vpack.c.bf16 %v53, %v52
    %v84 = vpack.c.bf16 %v55, %v54
    %v85 = vpack.c.bf16 %v57, %v56
    %v86 = vpack.c.bf16 %v59, %v58
    %v87 = vpack.c.bf16 %v61, %v60
    %v88 = vpack.c.bf16 %v63, %v62
    %v89 = vpack.c.bf16 %v65, %v64
    %v90 = vpack.c.bf16 %v67, %v66
    %v91 = vpack.c.bf16 %v69, %v68
    %v92 = vpack.c.bf16 %v71, %v70
    %v93 = vpack.c.bf16 %v73, %v72
    %v94 = vpack.c.bf16 %v75, %v74
    %v95 = vpack.c.bf16 %v77, %v76
    %v96 = vpack.c.bf16 %v79, %v78
    %v97 = vpack.c.bf16 %v81, %v80
    %v98 = vld [vmem:[%s2] sm:$0x1]
    %v100 = vperm.slane %v98, 0
    %102 = vmatpush.bf16.msra.mxu0 %v89
    %103 = vmatpush.bf16.msra.mxu0 %v88
    %104 = vmatpush.bf16.msra.mxu0 %v87
    %105 = vmatpush.bf16.msra.mxu0 %v86
    %106 = vmatpush.bf16.msra.mxu0 %v85
    %107 = vmatpush.bf16.msra.mxu0 %v84
    %108 = vmatpush.bf16.msra.mxu0 %v83
    %109 = vmatpush.bf16.msra.mxu0 %v82
    %110 = vmatmul.bf16.gmra.mxu0 %v48
    %v111 = vpop.f32.mrf.mxu0
    %v112 = vadd.f32 %v100, %v111
    %v113 = vpop.f32.mrf.mxu0
    %114 = vdwg.mxu0
    %115 = vmatpush.bf16.msra.mxu0 %v97
    %116 = vmatpush.bf16.msra.mxu0 %v96
    %117 = vmatpush.bf16.msra.mxu0 %v95
    %118 = vmatpush.bf16.msra.mxu0 %v94
    %119 = vmatpush.bf16.msra.mxu0 %v93
    %120 = vmatpush.bf16.msra.mxu0 %v92
    %121 = vmatpush.bf16.msra.mxu0 %v91
    %122 = vmatpush.bf16.msra.mxu0 %v90
    %123 = vmatmul.bf16.gmra.mxu0 %v49
    %v124 = vpop.f32.mrf.mxu0
    %v125 = vadd.f32 %v112, %v124
    %v126 = vpop.f32.mrf.mxu0
    %127 = vdwg.mxu0
    %v128 = vld [vmem:[%s3] sm:$0xff]
    %v129 = vld [vmem:[%s3 + $0x8] sm:$0xff]
    %v130 = vld [vmem:[%s3 + $0x10] sm:$0xff]
    %v131 = vld [vmem:[%s3 + $0x18] sm:$0xff]
    %v132 = vld [vmem:[%s3 + $0x20] sm:$0xff]
    %v133 = vld [vmem:[%s3 + $0x28] sm:$0xff]
    %v134 = vld [vmem:[%s3 + $0x30] sm:$0xff]
    %v135 = vld [vmem:[%s3 + $0x38] sm:$0xff]
    %v136 = vld [vmem:[%s3 + $0x40] sm:$0xff]
    %v137 = vld [vmem:[%s3 + $0x48] sm:$0xff]
    %v138 = vld [vmem:[%s3 + $0x50] sm:$0xff]
    %v139 = vld [vmem:[%s3 + $0x58] sm:$0xff]
    %v140 = vld [vmem:[%s3 + $0x60] sm:$0xff]
    %v141 = vld [vmem:[%s3 + $0x68] sm:$0xff]
    %v142 = vld [vmem:[%s3 + $0x70] sm:$0xff]
    %v143 = vld [vmem:[%s3 + $0x78] sm:$0xff]
    %v144 = vld [vmem:[%s3 + $0x80] sm:$0xff]
    %v145 = vld [vmem:[%s3 + $0x88] sm:$0xff]
    %v146 = vld [vmem:[%s3 + $0x90] sm:$0xff]
    %v147 = vld [vmem:[%s3 + $0x98] sm:$0xff]
    %v148 = vld [vmem:[%s3 + $0xa0] sm:$0xff]
    %v149 = vld [vmem:[%s3 + $0xa8] sm:$0xff]
    %v150 = vld [vmem:[%s3 + $0xb0] sm:$0xff]
    %v151 = vld [vmem:[%s3 + $0xb8] sm:$0xff]
    %v152 = vld [vmem:[%s3 + $0xc0] sm:$0xff]
    %v153 = vld [vmem:[%s3 + $0xc8] sm:$0xff]
    %v154 = vld [vmem:[%s3 + $0xd0] sm:$0xff]
    %v155 = vld [vmem:[%s3 + $0xd8] sm:$0xff]
    %v156 = vld [vmem:[%s3 + $0xe0] sm:$0xff]
    %v157 = vld [vmem:[%s3 + $0xe8] sm:$0xff]
    %v158 = vld [vmem:[%s3 + $0xf0] sm:$0xff]
    %v159 = vld [vmem:[%s3 + $0xf8] sm:$0xff]
    %v160 = vpack.c.bf16 %v129, %v128
    %v161 = vpack.c.bf16 %v131, %v130
    %v162 = vpack.c.bf16 %v133, %v132
    %v163 = vpack.c.bf16 %v135, %v134
    %v164 = vpack.c.bf16 %v137, %v136
    %v165 = vpack.c.bf16 %v139, %v138
    %v166 = vpack.c.bf16 %v141, %v140
    %v167 = vpack.c.bf16 %v143, %v142
    %v168 = vpack.c.bf16 %v145, %v144
    %v169 = vpack.c.bf16 %v147, %v146
    %v170 = vpack.c.bf16 %v149, %v148
    %v171 = vpack.c.bf16 %v151, %v150
    %v172 = vpack.c.bf16 %v153, %v152
    %v173 = vpack.c.bf16 %v155, %v154
    %v174 = vpack.c.bf16 %v157, %v156
    %v175 = vpack.c.bf16 %v159, %v158
    %v176 = vld [vmem:[%s4] sm:$0x1]
    %v178 = vperm.slane %v176, 0
    %180 = vmatpush.bf16.msra.mxu0 %v167
    %181 = vmatpush.bf16.msra.mxu0 %v166
    %182 = vmatpush.bf16.msra.mxu0 %v165
    %183 = vmatpush.bf16.msra.mxu0 %v164
    %184 = vmatpush.bf16.msra.mxu0 %v163
    %185 = vmatpush.bf16.msra.mxu0 %v162
    %186 = vmatpush.bf16.msra.mxu0 %v161
    %187 = vmatpush.bf16.msra.mxu0 %v160
    %188 = vmatmul.bf16.gmra.mxu0 %v48
    %v189 = vpop.f32.mrf.mxu0
    %v190 = vadd.f32 %v178, %v189
    %v191 = vpop.f32.mrf.mxu0
    %192 = vdwg.mxu0
    %193 = vmatpush.bf16.msra.mxu0 %v175
    %194 = vmatpush.bf16.msra.mxu0 %v174
    %195 = vmatpush.bf16.msra.mxu0 %v173
    %196 = vmatpush.bf16.msra.mxu0 %v172
    %197 = vmatpush.bf16.msra.mxu0 %v171
    %198 = vmatpush.bf16.msra.mxu0 %v170
    %199 = vmatpush.bf16.msra.mxu0 %v169
    %200 = vmatpush.bf16.msra.mxu0 %v168
    %201 = vmatmul.bf16.gmra.mxu0 %v49
    %v202 = vpop.f32.mrf.mxu0
    %v203 = vadd.f32 %v190, %v202
    %v204 = vpop.f32.mrf.mxu0
    %205 = vdwg.mxu0
    %v206 = vld [vmem:[%s5] sm:$0x3]
    %v207 = vmul.f32 %v203, 0.5
    %v208 = vmul.f32 %v207, 1.442695
    %v209 = vpow.pop %v208
    %v210 = vmul.f32 %v206, %v209
    %v211 = vadd.f32 %v125, %v210
    %v212 = vpack.c.bf16 %v211, %v211
    %v213 = vld [vmem:[%s7] sm:$0xff]
    %v214 = vld [vmem:[%s7 + $0x8] sm:$0xff]
    %v215 = vpack.c.bf16 %v213, %v213
    %v216 = vpack.c.bf16 %v214, %v214
    %v217 = vld [vmem:[%s6] sm:$0x3]
    %v218 = vpack.c.bf16 %v217, %v217
    %v219 = vld [vmem:[%s8] sm:$0xff]
    %221 = vst [vmem:[#allocation1] ss:$2 sm:$0xff] %v219
    %v222 = vld.sshfl [vmem:[#allocation1] sm:$0xff pattern:$0x75316420]
    %v223 = vld.sshfl [vmem:[#allocation1 + $0x8] sm:$0xff pattern:$0x75316420]
    %v226 = vpack.c.bf16 %v222, %v222
    %v227 = vpack.c.bf16 %v223, %v223
    %vm228 = vcmask 31744
    %v230 = vsel %vm228, %v218, 0
    %vm232 = vcmask 1041408
    %v234 = vsel %vm232, %v226, 0
    %v237 = vsel %vm232, %v227, 0
    %239 = vmatpush.bf16.msra.mxu0 0
    %240 = vmatpush.bf16.msra.mxu0 0
    %241 = vmatpush.bf16.msra.mxu0 0
    %242 = vmatpush.bf16.msra.mxu0 0
    %243 = vmatpush.bf16.msra.mxu0 0
    %244 = vmatpush.bf16.msra.mxu0 0
    %245 = vmatpush.bf16.msra.mxu0 0
    %246 = vmatpush.bf16.msra.mxu0 %v234
    %247 = vmatmul.bf16.gmra.mxu0 %v230
    %v248 = vpop.f32.mrf.mxu0
    %v249 = vadd.f32 0.0, %v248
    %v250 = vpop.f32.mrf.mxu0
    %251 = vdwg.mxu0
    %252 = vmatpush.bf16.msra.mxu0 0
    %253 = vmatpush.bf16.msra.mxu0 0
    %254 = vmatpush.bf16.msra.mxu0 0
    %255 = vmatpush.bf16.msra.mxu0 0
    %256 = vmatpush.bf16.msra.mxu0 0
    %257 = vmatpush.bf16.msra.mxu0 0
    %258 = vmatpush.bf16.msra.mxu0 0
    %259 = vmatpush.bf16.msra.mxu0 %v237
    %260 = vmatmul.bf16.gmra.mxu0 %v230
    %v261 = vpop.f32.mrf.mxu0
    %v262 = vadd.f32 0.0, %v261
    %v263 = vpop.f32.mrf.mxu0
    %264 = vdwg.mxu0
    %vm265 = vcmask 64512
    %v267 = vsel %vm265, %v212, 0
    %vm269 = vcmask 1043456
    %v271 = vsel %vm269, %v215, 0
    %v274 = vsel %vm269, %v216, 0
    %276 = vmatpush.bf16.msra.mxu0 0
    %277 = vmatpush.bf16.msra.mxu0 0
    %278 = vmatpush.bf16.msra.mxu0 0
    %279 = vmatpush.bf16.msra.mxu0 0
    %280 = vmatpush.bf16.msra.mxu0 0
    %281 = vmatpush.bf16.msra.mxu0 0
    %282 = vmatpush.bf16.msra.mxu0 0
    %283 = vmatpush.bf16.msra.mxu0 %v271
    %284 = vmatmul.bf16.gmra.mxu0 %v267
    %v285 = vpop.f32.mrf.mxu0
    %v286 = vadd.f32 %v249, %v285
    %v287 = vpop.f32.mrf.mxu0
    %288 = vdwg.mxu0
    %289 = vmatpush.bf16.msra.mxu0 0
    %290 = vmatpush.bf16.msra.mxu0 0
    %291 = vmatpush.bf16.msra.mxu0 0
    %292 = vmatpush.bf16.msra.mxu0 0
    %293 = vmatpush.bf16.msra.mxu0 0
    %294 = vmatpush.bf16.msra.mxu0 0
    %295 = vmatpush.bf16.msra.mxu0 0
    %296 = vmatpush.bf16.msra.mxu0 %v274
    %297 = vmatmul.bf16.gmra.mxu0 %v267
    %v298 = vpop.f32.mrf.mxu0
    %v299 = vadd.f32 %v262, %v298
    %v300 = vpop.f32.mrf.mxu0
    %301 = vdwg.mxu0
    %v302 = vld [vmem:[%s9] sm:$0x3]
    %v304 = vperm.slane %v302, 0
    %v305 = vperm.slane %v302, 1
    %v308 = vadd.f32 %v286, %v304
    %v309 = vadd.f32 %v299, %v305
    %vm310 = vcmask 58368
    %311 = vst.msk [vmem:[#allocation2] sm:$0x3] %vm310, %v125
    %312 = vst.msk [vmem:[#allocation4] sm:$0x3] %vm310, %v203
    %v313 = vmax.f32 %v308, 0.0
    %v314 = vmax.f32 %v309, 0.0
    %v317 = vrot.slane %v314, 6
    %v318 = vsel %vm232, %v313, %v317
    %320 = vst [vmem:[%s12] sm:$0xf] %v318
    // Predicated region
    $region42: #{vae_forward.10} parent=1 // pred_check
      _
    $region43: #{vae_forward.10} parent=1 // pred_check_branch
      %322 = sbr.rel (0) target = $region45
    $region44: #{vae_forward.10} parent=1 // pred_region
      %324 = vsyncadd [#allocation3], 0
      %s326 = sshll.u32 [#allocation2], 4
      %s327 = int_to_ptr.vmem [resolvable:$true] %s326
      %s328 = sshll.u32 %s10, 4
      %s329 = int_to_ptr.hbm [resolvable:$true] %s328
      %331 = dma.vmem_to_hbm [thread:$0]  %s327, 32, %s329, [#allocation3]
    $region45: #{vae_forward.10} parent=1 // pred_fallthru
      _
    // Predicated region
    $region46: #{vae_forward.10} parent=1 // pred_check
      _
    $region47: #{vae_forward.10} parent=1 // pred_check_branch
      %333 = sbr.rel (0) target = $region49
    $region48: #{vae_forward.10} parent=1 // pred_region
      %335 = vsyncadd [#allocation5], 0
      %s337 = sshll.u32 [#allocation4], 4
      %s338 = int_to_ptr.vmem [resolvable:$true] %s337
      %s339 = sshll.u32 %s11, 4
      %s340 = int_to_ptr.hbm [resolvable:$true] %s339
      %342 = dma.vmem_to_hbm [thread:$0]  %s338, 32, %s340, [#allocation5]
    $region49: #{vae_forward.10} parent=1 // pred_fallthru
      _
    // Predicated region
    $region50: #{vae_forward.10} parent=1 // pred_check
      _
    $region51: #{vae_forward.10} parent=1 // pred_check_branch
      %344 = sbr.rel (0) target = $region53
    $region52: #{vae_forward.10} parent=1 // pred_region
      _
    $region53: #{vae_forward.10} parent=1 // pred_fallthru
      _
    // Predicated region
    $region54: #{vae_forward.10} parent=1 // pred_check
      _
    $region55: #{vae_forward.10} parent=1 // pred_check_branch
      %346 = sbr.rel (0) target = $region57
    $region56: #{vae_forward.10} parent=1 // pred_region
      %348 = dma.done [#allocation3], 32
    $region57: #{vae_forward.10} parent=1 // pred_fallthru
      _
    // Predicated region
    $region58: #{vae_forward.10} parent=1 // pred_check
      _
    $region59: #{vae_forward.10} parent=1 // pred_check_branch
      %350 = sbr.rel (0) target = $region61
    $region60: #{vae_forward.10} parent=1 // pred_region
      %352 = dma.done [#allocation5], 32
    $region61: #{vae_forward.10} parent=1 // pred_fallthru
      _
    // Predicated region
    $region62: #{vae_forward.10} parent=1 // pred_check
      _
    $region63: #{vae_forward.10} parent=1 // pred_check_branch
      %354 = sbr.rel (0) target = $region65
    $region64: #{vae_forward.10} parent=1 // pred_region
      _
    $region65: #{vae_forward.10} parent=1 // pred_fallthru
      _
    %355 = vsyncpa [#allocation3], 1
    %356 = vsyncpa [#allocation5], 1

// kernel: vae_forward.11
$region0: #{vae_forward.11}
  #allocation0 [shape = 'u32[]', space=smem, size = 0x4, offset = 0x4, fixed_abs, tag = 'smem constant byte address 0x4 - core index']
  #allocation1 [shape = 'u32[72,128]{1,0:T(1,128)}', space=vmem, size = 0x9000, scoped, tag = 'internal scratch']
  %s0 = inlined_call_operand.vmem [shape: f32[8,144], index: 0, kind: input, shape index: {}]
  %s1 = inlined_call_operand.vmem [shape: f32[144,98], index: 1, kind: input, shape index: {}]
  %s2 = inlined_call_operand.vmem [shape: f32[8,1], index: 2, kind: input, shape index: {}]
  %s3 = inlined_call_operand.vmem [shape: f32[8,98], index: 3, kind: output, shape index: {}]
  %s4 = sld [smem:[#allocation0]]
  $region22: #{vae_forward.11} parent=0
    _
  %s6 = ssub.s32 1, %s4
  %s7 = scalar_select 0, %s6, %s4
  // Predicated region
  $region2: #{vae_forward.11} parent=0 // pred_check
    _
  $region3: #{vae_forward.11} parent=0 // pred_check_branch
    %9 = sbr.rel (0) target = $region5
  $region4: #{vae_forward.11} parent=0 // pred_region
    _
  $region5: #{vae_forward.11} parent=0 // pred_fallthru
    _
  // Predicated region
  $region6: #{vae_forward.11} parent=0 // pred_check
    _
  $region7: #{vae_forward.11} parent=0 // pred_check_branch
    %11 = sbr.rel (0) target = $region9
  $region8: #{vae_forward.11} parent=0 // pred_region
    _
  $region9: #{vae_forward.11} parent=0 // pred_fallthru
    _
  // Predicated region
  $region10: #{vae_forward.11} parent=0 // pred_check
    _
  $region11: #{vae_forward.11} parent=0 // pred_check_branch
    %13 = sbr.rel (0) target = $region13
  $region12: #{vae_forward.11} parent=0 // pred_region
    _
  $region13: #{vae_forward.11} parent=0 // pred_fallthru
    _
  %v15 = vld [vmem:[%s0] sm:$0xff]
  %v16 = vld [vmem:[%s0 + $0x8] sm:$0xff]
  %v17 = vpack.c.bf16 %v15, %v15
  %v18 = vpack.c.bf16 %v16, %v16
  %v19 = vld [vmem:[%s1] sm:$0xff]
  %v20 = vld [vmem:[%s1 + $0x8] sm:$0xff]
  %v21 = vld [vmem:[%s1 + $0x10] sm:$0xff]
  %v22 = vld [vmem:[%s1 + $0x18] sm:$0xff]
  %v23 = vld [vmem:[%s1 + $0x20] sm:$0xff]
  %v24 = vld [vmem:[%s1 + $0x28] sm:$0xff]
  %v25 = vld [vmem:[%s1 + $0x30] sm:$0xff]
  %v26 = vld [vmem:[%s1 + $0x38] sm:$0xff]
  %v27 = vld [vmem:[%s1 + $0x40] sm:$0xff]
  %v28 = vld [vmem:[%s1 + $0x48] sm:$0xff]
  %v29 = vld [vmem:[%s1 + $0x50] sm:$0xff]
  %v30 = vld [vmem:[%s1 + $0x58] sm:$0xff]
  %v31 = vld [vmem:[%s1 + $0x60] sm:$0xff]
  %v32 = vld [vmem:[%s1 + $0x68] sm:$0xff]
  %v33 = vld [vmem:[%s1 + $0x70] sm:$0xff]
  %v34 = vld [vmem:[%s1 + $0x78] sm:$0xff]
  %v35 = vld [vmem:[%s1 + $0x80] sm:$0xff]
  %v36 = vld [vmem:[%s1 + $0x88] sm:$0xff]
  %v37 = vpack.c.bf16 %v20, %v19
  %v38 = vpack.c.bf16 %v22, %v21
  %v39 = vpack.c.bf16 %v24, %v23
  %v40 = vpack.c.bf16 %v26, %v25
  %v41 = vpack.c.bf16 %v28, %v27
  %v42 = vpack.c.bf16 %v30, %v29
  %v43 = vpack.c.bf16 %v32, %v31
  %v44 = vpack.c.bf16 %v34, %v33
  %v45 = vpack.c.bf16 %v36, %v35
  %v46 = vld [vmem:[%s2] sm:$0xff]
  %48 = vset.pattern.permute.xlu0 0
  %49 = vperm.xlu0 %48, %v46
  %v50 = vpop.permute.xlu0 %49
  %vm52 = vcmask 130048
  %v54 = vsel %vm52, %v18, 0
  %56 = vmatpush.bf16.msra.mxu0 %v44
  %57 = vmatpush.bf16.msra.mxu0 %v43
  %58 = vmatpush.bf16.msra.mxu0 %v42
  %59 = vmatpush.bf16.msra.mxu0 %v41
  %60 = vmatpush.bf16.msra.mxu0 %v40
  %61 = vmatpush.bf16.msra.mxu0 %v39
  %62 = vmatpush.bf16.msra.mxu0 %v38
  %63 = vmatpush.bf16.msra.mxu0 %v37
  %64 = vmatmul.bf16.gmra.mxu0 %v17
  %v65 = vpop.f32.mrf.mxu0
  %v66 = vadd.f32 %v50, %v65
  %v67 = vpop.f32.mrf.mxu0
  %68 = vdwg.mxu0
  %69 = vmatpush.bf16.msra.mxu0 0
  %70 = vmatpush.bf16.msra.mxu0 0
  %71 = vmatpush.bf16.msra.mxu0 0
  %72 = vmatpush.bf16.msra.mxu0 0
  %73 = vmatpush.bf16.msra.mxu0 0
  %74 = vmatpush.bf16.msra.mxu0 0
  %75 = vmatpush.bf16.msra.mxu0 0
  %76 = vmatpush.bf16.msra.mxu0 %v45
  %77 = vmatmul.bf16.gmra.mxu0 %v54
  %v78 = vpop.f32.mrf.mxu0
  %v79 = vadd.f32 %v66, %v78
  %v80 = vpop.f32.mrf.mxu0
  %81 = vdwg.mxu0
  %v82 = vmax.f32 %v79, 0.0
  %vm83 = vcmask 801792
  %84 = vst.msk [vmem:[%s3] sm:$0xff] %vm83, %v82
  // Predicated region
  $region14: #{vae_forward.11} parent=0 // pred_check
    _
  $region15: #{vae_forward.11} parent=0 // pred_check_branch
    %86 = sbr.rel (0) target = $region17
  $region16: #{vae_forward.11} parent=0 // pred_region
    _
  $region17: #{vae_forward.11} parent=0 // pred_fallthru
    _
  // Predicated region
  $region18: #{vae_forward.11} parent=0 // pred_check
    _
  $region19: #{vae_forward.11} parent=0 // pred_check_branch
    %88 = sbr.rel (0) target = $region21
  $region20: #{vae_forward.11} parent=0 // pred_region
    _
  $region21: #{vae_forward.11} parent=0 // pred_fallthru
    _

// kernel: vae_forward.12
$region0: #{vae_forward.12}
  #allocation0 [shape = 'u32[]', space=smem, size = 0x4, offset = 0x4, fixed_abs, tag = 'smem constant byte address 0x4 - core index']
  #allocation1 [shape = 'u32[72,128]{1,0:T(1,128)}', space=vmem, size = 0x9000, scoped, tag = 'internal scratch']
  %s0 = inlined_call_operand.vmem [shape: f32[4,72], index: 0, kind: input, shape index: {}]
  %s1 = inlined_call_operand.vmem [shape: f32[72,392], index: 1, kind: input, shape index: {}]
  %s2 = inlined_call_operand.vmem [shape: f32[4,1], index: 2, kind: input, shape index: {}]
  %s3 = inlined_call_operand.vmem [shape: f32[4,392], index: 3, kind: output, shape index: {}]
  %s4 = sld [smem:[#allocation0]]
  $region22: #{vae_forward.12} parent=0
    _
  %s6 = ssub.s32 1, %s4
  %s7 = scalar_select 0, %s6, %s4
  // Predicated region
  $region2: #{vae_forward.12} parent=0 // pred_check
    _
  $region3: #{vae_forward.12} parent=0 // pred_check_branch
    %9 = sbr.rel (0) target = $region5
  $region4: #{vae_forward.12} parent=0 // pred_region
    _
  $region5: #{vae_forward.12} parent=0 // pred_fallthru
    _
  // Predicated region
  $region6: #{vae_forward.12} parent=0 // pred_check
    _
  $region7: #{vae_forward.12} parent=0 // pred_check_branch
    %11 = sbr.rel (0) target = $region9
  $region8: #{vae_forward.12} parent=0 // pred_region
    _
  $region9: #{vae_forward.12} parent=0 // pred_fallthru
    _
  // Predicated region
  $region10: #{vae_forward.12} parent=0 // pred_check
    _
  $region11: #{vae_forward.12} parent=0 // pred_check_branch
    %13 = sbr.rel (0) target = $region13
  $region12: #{vae_forward.12} parent=0 // pred_region
    _
  $region13: #{vae_forward.12} parent=0 // pred_fallthru
    _
  %v15 = vld [vmem:[%s0] sm:$0xf]
  %v16 = vpack.c.bf16 %v15, %v15
  %v17 = vld [vmem:[%s1] sm:$0xff]
  %v18 = vld [vmem:[%s1 + $0x8] sm:$0xff]
  %v19 = vld [vmem:[%s1 + $0x10] sm:$0xff]
  %v20 = vld [vmem:[%s1 + $0x18] sm:$0xff]
  %v21 = vld [vmem:[%s1 + $0x20] sm:$0xff]
  %v22 = vld [vmem:[%s1 + $0x28] sm:$0xff]
  %v23 = vld [vmem:[%s1 + $0x30] sm:$0xff]
  %v24 = vld [vmem:[%s1 + $0x38] sm:$0xff]
  %v25 = vld [vmem:[%s1 + $0x40] sm:$0xff]
  %v26 = vld [vmem:[%s1 + $0x48] sm:$0xff]
  %v27 = vld [vmem:[%s1 + $0x50] sm:$0xff]
  %v28 = vld [vmem:[%s1 + $0x58] sm:$0xff]
  %v29 = vld [vmem:[%s1 + $0x60] sm:$0xff]
  %v30 = vld [vmem:[%s1 + $0x68] sm:$0xff]
  %v31 = vld [vmem:[%s1 + $0x70] sm:$0xff]
  %v32 = vld [vmem:[%s1 + $0x78] sm:$0xff]
  %v33 = vld [vmem:[%s1 + $0x80] sm:$0xff]
  %v34 = vld [vmem:[%s1 + $0x88] sm:$0xff]
  %v35 = vld [vmem:[%s1 + $0x90] sm:$0xff]
  %v36 = vld [vmem:[%s1 + $0x98] sm:$0xff]
  %v37 = vld [vmem:[%s1 + $0xa0] sm:$0xff]
  %v38 = vld [vmem:[%s1 + $0xa8] sm:$0xff]
  %v39 = vld [vmem:[%s1 + $0xb0] sm:$0xff]
  %v40 = vld [vmem:[%s1 + $0xb8] sm:$0xff]
  %v41 = vld [vmem:[%s1 + $0xc0] sm:$0xff]
  %v42 = vld [vmem:[%s1 + $0xc8] sm:$0xff]
  %v43 = vld [vmem:[%s1 + $0xd0] sm:$0xff]
  %v44 = vld [vmem:[%s1 + $0xd8] sm:$0xff]
  %v45 = vld [vmem:[%s1 + $0xe0] sm:$0xff]
  %v46 = vld [vmem:[%s1 + $0xe8] sm:$0xff]
  %v47 = vld [vmem:[%s1 + $0xf0] sm:$0xff]
  %v48 = vld [vmem:[%s1 + $0xf8] sm:$0xff]
  %v49 = vld [vmem:[%s1 + $0x100] sm:$0xff]
  %v50 = vld [vmem:[%s1 + $0x108] sm:$0xff]
  %v51 = vld [vmem:[%s1 + $0x110] sm:$0xff]
  %v52 = vld [vmem:[%s1 + $0x118] sm:$0xff]
  %v53 = vpack.c.bf16 %v21, %v17
  %v54 = vpack.c.bf16 %v22, %v18
  %v55 = vpack.c.bf16 %v23, %v19
  %v56 = vpack.c.bf16 %v24, %v20
  %v57 = vpack.c.bf16 %v29, %v25
  %v58 = vpack.c.bf16 %v30, %v26
  %v59 = vpack.c.bf16 %v31, %v27
  %v60 = vpack.c.bf16 %v32, %v28
  %v61 = vpack.c.bf16 %v37, %v33
  %v62 = vpack.c.bf16 %v38, %v34
  %v63 = vpack.c.bf16 %v39, %v35
  %v64 = vpack.c.bf16 %v40, %v36
  %v65 = vpack.c.bf16 %v45, %v41
  %v66 = vpack.c.bf16 %v46, %v42
  %v67 = vpack.c.bf16 %v47, %v43
  %v68 = vpack.c.bf16 %v48, %v44
  %v69 = vpack.c.bf16 %v49, %v49
  %v70 = vpack.c.bf16 %v50, %v50
  %v71 = vpack.c.bf16 %v51, %v51
  %v72 = vpack.c.bf16 %v52, %v52
  %v73 = vld [vmem:[%s2] sm:$0xf]
  %75 = vset.pattern.permute.xlu0 0
  %76 = vperm.xlu0 %75, %v73
  %v77 = vpop.permute.xlu0 %76
  %vm79 = vcmask 588800
  %v81 = vsel %vm79, %v16, 0
  %vm83 = vcmask 1043456
  %v85 = vsel %vm83, %v69, 0
  %v88 = vsel %vm83, %v70, 0
  %v91 = vsel %vm83, %v71, 0
  %v94 = vsel %vm83, %v72, 0
  %96 = vmatpush.bf16.msra.mxu0 0
  %97 = vmatpush.bf16.msra.mxu0 0
  %98 = vmatpush.bf16.msra.mxu0 0
  %99 = vmatpush.bf16.msra.mxu0 %v85
  %100 = vmatpush.bf16.msra.mxu0 %v65
  %101 = vmatpush.bf16.msra.mxu0 %v61
  %102 = vmatpush.bf16.msra.mxu0 %v57
  %103 = vmatpush.bf16.msra.mxu0 %v53
  %104 = vmatmul.bf16.gmra.mxu0 %v81
  %v105 = vpop.f32.mrf.mxu0
  %v106 = vadd.f32 %v77, %v105
  %v107 = vpop.f32.mrf.mxu0
  %108 = vdwg.mxu0
  %109 = vmatpush.bf16.msra.mxu0 0
  %110 = vmatpush.bf16.msra.mxu0 0
  %111 = vmatpush.bf16.msra.mxu0 0
  %112 = vmatpush.bf16.msra.mxu0 %v88
  %113 = vmatpush.bf16.msra.mxu0 %v66
  %114 = vmatpush.bf16.msra.mxu0 %v62
  %115 = vmatpush.bf16.msra.mxu0 %v58
  %116 = vmatpush.bf16.msra.mxu0 %v54
  %117 = vmatmul.bf16.gmra.mxu0 %v81
  %v118 = vpop.f32.mrf.mxu0
  %v119 = vadd.f32 %v77, %v118
  %v120 = vpop.f32.mrf.mxu0
  %121 = vdwg.mxu0
  %122 = vmatpush.bf16.msra.mxu0 0
  %123 = vmatpush.bf16.msra.mxu0 0
  %124 = vmatpush.bf16.msra.mxu0 0
  %125 = vmatpush.bf16.msra.mxu0 %v91
  %126 = vmatpush.bf16.msra.mxu0 %v67
  %127 = vmatpush.bf16.msra.mxu0 %v63
  %128 = vmatpush.bf16.msra.mxu0 %v59
  %129 = vmatpush.bf16.msra.mxu0 %v55
  %130 = vmatmul.bf16.gmra.mxu0 %v81
  %v131 = vpop.f32.mrf.mxu0
  %v132 = vadd.f32 %v77, %v131
  %v133 = vpop.f32.mrf.mxu0
  %134 = vdwg.mxu0
  %135 = vmatpush.bf16.msra.mxu0 0
  %136 = vmatpush.bf16.msra.mxu0 0
  %137 = vmatpush.bf16.msra.mxu0 0
  %138 = vmatpush.bf16.msra.mxu0 %v94
  %139 = vmatpush.bf16.msra.mxu0 %v68
  %140 = vmatpush.bf16.msra.mxu0 %v64
  %141 = vmatpush.bf16.msra.mxu0 %v60
  %142 = vmatpush.bf16.msra.mxu0 %v56
  %143 = vmatmul.bf16.gmra.mxu0 %v81
  %v144 = vpop.f32.mrf.mxu0
  %v145 = vadd.f32 %v77, %v144
  %v146 = vpop.f32.mrf.mxu0
  %147 = vdwg.mxu0
  %v148 = vmax.f32 %v106, 0.0
  %v149 = vmax.f32 %v119, 0.0
  %v150 = vmax.f32 %v132, 0.0
  %v151 = vmax.f32 %v145, 0.0
  %v156 = vrot.slane %v149, 4
  %v157 = vrot.slane %v151, 4
  %v158 = vsel %vm83, %v148, %v156
  %v159 = vsel %vm83, %v150, %v157
  %162 = vst [vmem:[%s3] sm:$0xff] %v158
  %vm163 = vcmask 64516
  %vm164 = vmor %vm163, %vm83
  %165 = vst.msk [vmem:[%s3 + $0x8] sm:$0xff] %vm164, %v159
  // Predicated region
  $region14: #{vae_forward.12} parent=0 // pred_check
    _
  $region15: #{vae_forward.12} parent=0 // pred_check_branch
    %167 = sbr.rel (0) target = $region17
  $region16: #{vae_forward.12} parent=0 // pred_region
    _
  $region17: #{vae_forward.12} parent=0 // pred_fallthru
    _
  // Predicated region
  $region18: #{vae_forward.12} parent=0 // pred_check
    _
  $region19: #{vae_forward.12} parent=0 // pred_check_branch
    %169 = sbr.rel (0) target = $region21
  $region20: #{vae_forward.12} parent=0 // pred_region
    _
  $region21: #{vae_forward.12} parent=0 // pred_fallthru
    _

// kernel: vae_forward.13
$region0: #{vae_forward.13}
  #allocation0 [shape = 'u32[]', space=smem, size = 0x4, offset = 0x4, fixed_abs, tag = 'smem constant byte address 0x4 - core index']
  #allocation1 [shape = 'u32[72,128]{1,0:T(1,128)}', space=vmem, size = 0x9000, scoped, tag = 'internal scratch']
  #allocation2 [shape = 'f32[1,1]{1,0:T(1,128)S(1)}', space=vmem, size = 0x200, scoped, tag = 'scoped memory for vae_forward.13']
  %s0 = inlined_call_operand.vmem [shape: f32[1,36], index: 0, kind: input, shape index: {}]
  %s1 = inlined_call_operand.vmem [shape: f32[36,1568], index: 1, kind: input, shape index: {}]
  %s2 = inlined_call_operand.<no memory space> [shape: f32[1,1], index: 2, kind: input, shape index: {}]
  %s3 = inlined_call_operand.vmem [shape: f32[1,1568], index: 3, kind: output, shape index: {}]
  %s4 = sld [smem:[#allocation0]]
  $region22: #{vae_forward.13} parent=0
    _
  %s6 = ssub.s32 1, %s4
  %s7 = scalar_select 0, %s6, %s4
  %v8 = vstv %s2
  %9 = vst [vmem:[#allocation2] sm:$0x1] %v8
  // Predicated region
  $region2: #{vae_forward.13} parent=0 // pred_check
    _
  $region3: #{vae_forward.13} parent=0 // pred_check_branch
    %11 = sbr.rel (0) target = $region5
  $region4: #{vae_forward.13} parent=0 // pred_region
    _
  $region5: #{vae_forward.13} parent=0 // pred_fallthru
    _
  // Predicated region
  $region6: #{vae_forward.13} parent=0 // pred_check
    _
  $region7: #{vae_forward.13} parent=0 // pred_check_branch
    %13 = sbr.rel (0) target = $region9
  $region8: #{vae_forward.13} parent=0 // pred_region
    _
  $region9: #{vae_forward.13} parent=0 // pred_fallthru
    _
  // Predicated region
  $region10: #{vae_forward.13} parent=0 // pred_check
    _
  $region11: #{vae_forward.13} parent=0 // pred_check_branch
    %15 = sbr.rel (0) target = $region13
  $region12: #{vae_forward.13} parent=0 // pred_region
    _
  $region13: #{vae_forward.13} parent=0 // pred_fallthru
    _
  %v17 = vld [vmem:[%s0] sm:$0x1]
  %v18 = vpack.c.bf16 %v17, %v17
  %v19 = vld [vmem:[%s1] sm:$0xff]
  %v20 = vld [vmem:[%s1 + $0x8] sm:$0xff]
  %v21 = vld [vmem:[%s1 + $0x10] sm:$0xff]
  %v22 = vld [vmem:[%s1 + $0x18] sm:$0xff]
  %v23 = vld [vmem:[%s1 + $0x20] sm:$0xff]
  %v24 = vld [vmem:[%s1 + $0x28] sm:$0xff]
  %v25 = vld [vmem:[%s1 + $0x30] sm:$0xff]
  %v26 = vld [vmem:[%s1 + $0x38] sm:$0xff]
  %v27 = vld [vmem:[%s1 + $0x40] sm:$0xff]
  %v28 = vld [vmem:[%s1 + $0x48] sm:$0xff]
  %v29 = vld [vmem:[%s1 + $0x50] sm:$0xff]
  %v30 = vld [vmem:[%s1 + $0x58] sm:$0xff]
  %v31 = vld [vmem:[%s1 + $0x60] sm:$0xff]
  %v32 = vld [vmem:[%s1 + $0x68] sm:$0xff]
  %v33 = vld [vmem:[%s1 + $0x70] sm:$0xff]
  %v34 = vld [vmem:[%s1 + $0x78] sm:$0xff]
  %v35 = vld [vmem:[%s1 + $0x80] sm:$0xff]
  %v36 = vld [vmem:[%s1 + $0x88] sm:$0xff]
  %v37 = vld [vmem:[%s1 + $0x90] sm:$0xff]
  %v38 = vld [vmem:[%s1 + $0x98] sm:$0xff]
  %v39 = vld [vmem:[%s1 + $0xa0] sm:$0xff]
  %v40 = vld [vmem:[%s1 + $0xa8] sm:$0xff]
  %v41 = vld [vmem:[%s1 + $0xb0] sm:$0xff]
  %v42 = vld [vmem:[%s1 + $0xb8] sm:$0xff]
  %v43 = vld [vmem:[%s1 + $0xc0] sm:$0xff]
  %v44 = vld [vmem:[%s1 + $0xc8] sm:$0xff]
  %v45 = vld [vmem:[%s1 + $0xd0] sm:$0xff]
  %v46 = vld [vmem:[%s1 + $0xd8] sm:$0xff]
  %v47 = vld [vmem:[%s1 + $0xe0] sm:$0xff]
  %v48 = vld [vmem:[%s1 + $0xe8] sm:$0xff]
  %v49 = vld [vmem:[%s1 + $0xf0] sm:$0xff]
  %v50 = vld [vmem:[%s1 + $0xf8] sm:$0xff]
  %v51 = vld [vmem:[%s1 + $0x100] sm:$0xff]
  %v52 = vld [vmem:[%s1 + $0x108] sm:$0xff]
  %v53 = vld [vmem:[%s1 + $0x110] sm:$0xff]
  %v54 = vld [vmem:[%s1 + $0x118] sm:$0xff]
  %v55 = vld [vmem:[%s1 + $0x120] sm:$0xff]
  %v56 = vld [vmem:[%s1 + $0x128] sm:$0xff]
  %v57 = vld [vmem:[%s1 + $0x130] sm:$0xff]
  %v58 = vld [vmem:[%s1 + $0x138] sm:$0xff]
  %v59 = vld [vmem:[%s1 + $0x140] sm:$0xff]
  %v60 = vld [vmem:[%s1 + $0x148] sm:$0xff]
  %v61 = vld [vmem:[%s1 + $0x150] sm:$0xff]
  %v62 = vld [vmem:[%s1 + $0x158] sm:$0xff]
  %v63 = vld [vmem:[%s1 + $0x160] sm:$0xff]
  %v64 = vld [vmem:[%s1 + $0x168] sm:$0xff]
  %v65 = vld [vmem:[%s1 + $0x170] sm:$0xff]
  %v66 = vld [vmem:[%s1 + $0x178] sm:$0xff]
  %v67 = vld [vmem:[%s1 + $0x180] sm:$0xff]
  %v68 = vld [vmem:[%s1 + $0x188] sm:$0xff]
  %v69 = vld [vmem:[%s1 + $0x190] sm:$0xff]
  %v70 = vld [vmem:[%s1 + $0x198] sm:$0xff]
  %v71 = vld [vmem:[%s1 + $0x1a0] sm:$0xf]
  %v72 = vld [vmem:[%s1 + $0x1a8] sm:$0xf]
  %v73 = vld [vmem:[%s1 + $0x1b0] sm:$0xf]
  %v74 = vld [vmem:[%s1 + $0x1b8] sm:$0xf]
  %v75 = vld [vmem:[%s1 + $0x1c0] sm:$0xf]
  %v76 = vld [vmem:[%s1 + $0x1c8] sm:$0xf]
  %v77 = vld [vmem:[%s1 + $0x1d0] sm:$0xf]
  %v78 = vld [vmem:[%s1 + $0x1d8] sm:$0xf]
  %v79 = vld [vmem:[%s1 + $0x1e0] sm:$0xf]
  %v80 = vld [vmem:[%s1 + $0x1e8] sm:$0xf]
  %v81 = vld [vmem:[%s1 + $0x1f0] sm:$0xf]
  %v82 = vld [vmem:[%s1 + $0x1f8] sm:$0xf]
  %v83 = vld [vmem:[%s1 + $0x200] sm:$0xf]
  %v84 = vpack.c.bf16 %v32, %v19
  %v85 = vpack.c.bf16 %v33, %v20
  %v86 = vpack.c.bf16 %v34, %v21
  %v87 = vpack.c.bf16 %v35, %v22
  %v88 = vpack.c.bf16 %v36, %v23
  %v89 = vpack.c.bf16 %v37, %v24
  %v90 = vpack.c.bf16 %v38, %v25
  %v91 = vpack.c.bf16 %v39, %v26
  %v92 = vpack.c.bf16 %v40, %v27
  %v93 = vpack.c.bf16 %v41, %v28
  %v94 = vpack.c.bf16 %v42, %v29
  %v95 = vpack.c.bf16 %v43, %v30
  %v96 = vpack.c.bf16 %v44, %v31
  %v97 = vpack.c.bf16 %v58, %v45
  %v98 = vpack.c.bf16 %v59, %v46
  %v99 = vpack.c.bf16 %v60, %v47
  %v100 = vpack.c.bf16 %v61, %v48
  %v101 = vpack.c.bf16 %v62, %v49
  %v102 = vpack.c.bf16 %v63, %v50
  %v103 = vpack.c.bf16 %v64, %v51
  %v104 = vpack.c.bf16 %v65, %v52
  %v105 = vpack.c.bf16 %v66, %v53
  %v106 = vpack.c.bf16 %v67, %v54
  %v107 = vpack.c.bf16 %v68, %v55
  %v108 = vpack.c.bf16 %v69, %v56
  %v109 = vpack.c.bf16 %v70, %v57
  %v110 = vpack.c.bf16 %v71, %v71
  %v111 = vpack.c.bf16 %v72, %v72
  %v112 = vpack.c.bf16 %v73, %v73
  %v113 = vpack.c.bf16 %v74, %v74
  %v114 = vpack.c.bf16 %v75, %v75
  %v115 = vpack.c.bf16 %v76, %v76
  %v116 = vpack.c.bf16 %v77, %v77
  %v117 = vpack.c.bf16 %v78, %v78
  %v118 = vpack.c.bf16 %v79, %v79
  %v119 = vpack.c.bf16 %v80, %v80
  %v120 = vpack.c.bf16 %v81, %v81
  %v121 = vpack.c.bf16 %v82, %v82
  %v122 = vpack.c.bf16 %v83, %v83
  %v123 = vld [vmem:[#allocation2] sm:$0x1]
  %125 = vset.pattern.permute.xlu0 0
  %126 = vperm.xlu0 %125, %v123
  %v127 = vpop.permute.xlu0 %126
  %v129 = vperm.slane %v127, 0
  %vm130 = vcmask 293888
  %v132 = vsel %vm130, %v18, 0
  %vm134 = vcmask 1041408
  %v136 = vsel %vm134, %v110, 0
  %v139 = vsel %vm134, %v111, 0
  %v142 = vsel %vm134, %v112, 0
  %v145 = vsel %vm134, %v113, 0
  %v148 = vsel %vm134, %v114, 0
  %v151 = vsel %vm134, %v115, 0
  %v154 = vsel %vm134, %v116, 0
  %v157 = vsel %vm134, %v117, 0
  %v160 = vsel %vm134, %v118, 0
  %v163 = vsel %vm134, %v119, 0
  %v166 = vsel %vm134, %v120, 0
  %v169 = vsel %vm134, %v121, 0
  %v172 = vsel %vm134, %v122, 0
  %174 = vmatpush.bf16.msra.mxu0 0
  %175 = vmatpush.bf16.msra.mxu0 0
  %176 = vmatpush.bf16.msra.mxu0 0
  %177 = vmatpush.bf16.msra.mxu0 0
  %178 = vmatpush.bf16.msra.mxu0 0
  %179 = vmatpush.bf16.msra.mxu0 %v136
  %180 = vmatpush.bf16.msra.mxu0 %v97
  %181 = vmatpush.bf16.msra.mxu0 %v84
  %182 = vmatmul.bf16.gmra.mxu0 %v132
  %v183 = vpop.f32.mrf.mxu0
  %v184 = vadd.f32 %v129, %v183
  %v185 = vpop.f32.mrf.mxu0
  %186 = vdwg.mxu0
  %187 = vmatpush.bf16.msra.mxu0 0
  %188 = vmatpush.bf16.msra.mxu0 0
  %189 = vmatpush.bf16.msra.mxu0 0
  %190 = vmatpush.bf16.msra.mxu0 0
  %191 = vmatpush.bf16.msra.mxu0 0
  %192 = vmatpush.bf16.msra.mxu0 %v139
  %193 = vmatpush.bf16.msra.mxu0 %v98
  %194 = vmatpush.bf16.msra.mxu0 %v85
  %195 = vmatmul.bf16.gmra.mxu0 %v132
  %v196 = vpop.f32.mrf.mxu0
  %v197 = vadd.f32 %v129, %v196
  %v198 = vpop.f32.mrf.mxu0
  %199 = vdwg.mxu0
  %200 = vmatpush.bf16.msra.mxu0 0
  %201 = vmatpush.bf16.msra.mxu0 0
  %202 = vmatpush.bf16.msra.mxu0 0
  %203 = vmatpush.bf16.msra.mxu0 0
  %204 = vmatpush.bf16.msra.mxu0 0
  %205 = vmatpush.bf16.msra.mxu0 %v142
  %206 = vmatpush.bf16.msra.mxu0 %v99
  %207 = vmatpush.bf16.msra.mxu0 %v86
  %208 = vmatmul.bf16.gmra.mxu0 %v132
  %v209 = vpop.f32.mrf.mxu0
  %v210 = vadd.f32 %v129, %v209
  %v211 = vpop.f32.mrf.mxu0
  %212 = vdwg.mxu0
  %213 = vmatpush.bf16.msra.mxu0 0
  %214 = vmatpush.bf16.msra.mxu0 0
  %215 = vmatpush.bf16.msra.mxu0 0
  %216 = vmatpush.bf16.msra.mxu0 0
  %217 = vmatpush.bf16.msra.mxu0 0
  %218 = vmatpush.bf16.msra.mxu0 %v145
  %219 = vmatpush.bf16.msra.mxu0 %v100
  %220 = vmatpush.bf16.msra.mxu0 %v87
  %221 = vmatmul.bf16.gmra.mxu0 %v132
  %v222 = vpop.f32.mrf.mxu0
  %v223 = vadd.f32 %v129, %v222
  %v224 = vpop.f32.mrf.mxu0
  %225 = vdwg.mxu0
  %226 = vmatpush.bf16.msra.mxu0 0
  %227 = vmatpush.bf16.msra.mxu0 0
  %228 = vmatpush.bf16.msra.mxu0 0
  %229 = vmatpush.bf16.msra.mxu0 0
  %230 = vmatpush.bf16.msra.mxu0 0
  %231 = vmatpush.bf16.msra.mxu0 %v148
  %232 = vmatpush.bf16.msra.mxu0 %v101
  %233 = vmatpush.bf16.msra.mxu0 %v88
  %234 = vmatmul.bf16.gmra.mxu0 %v132
  %v235 = vpop.f32.mrf.mxu0
  %v236 = vadd.f32 %v129, %v235
  %v237 = vpop.f32.mrf.mxu0
  %238 = vdwg.mxu0
  %239 = vmatpush.bf16.msra.mxu0 0
  %240 = vmatpush.bf16.msra.mxu0 0
  %241 = vmatpush.bf16.msra.mxu0 0
  %242 = vmatpush.bf16.msra.mxu0 0
  %243 = vmatpush.bf16.msra.mxu0 0
  %244 = vmatpush.bf16.msra.mxu0 %v151
  %245 = vmatpush.bf16.msra.mxu0 %v102
  %246 = vmatpush.bf16.msra.mxu0 %v89
  %247 = vmatmul.bf16.gmra.mxu0 %v132
  %v248 = vpop.f32.mrf.mxu0
  %v249 = vadd.f32 %v129, %v248
  %v250 = vpop.f32.mrf.mxu0
  %251 = vdwg.mxu0
  %252 = vmatpush.bf16.msra.mxu0 0
  %253 = vmatpush.bf16.msra.mxu0 0
  %254 = vmatpush.bf16.msra.mxu0 0
  %255 = vmatpush.bf16.msra.mxu0 0
  %256 = vmatpush.bf16.msra.mxu0 0
  %257 = vmatpush.bf16.msra.mxu0 %v154
  %258 = vmatpush.bf16.msra.mxu0 %v103
  %259 = vmatpush.bf16.msra.mxu0 %v90
  %260 = vmatmul.bf16.gmra.mxu0 %v132
  %v261 = vpop.f32.mrf.mxu0
  %v262 = vadd.f32 %v129, %v261
  %v263 = vpop.f32.mrf.mxu0
  %264 = vdwg.mxu0
  %265 = vmatpush.bf16.msra.mxu0 0
  %266 = vmatpush.bf16.msra.mxu0 0
  %267 = vmatpush.bf16.msra.mxu0 0
  %268 = vmatpush.bf16.msra.mxu0 0
  %269 = vmatpush.bf16.msra.mxu0 0
  %270 = vmatpush.bf16.msra.mxu0 %v157
  %271 = vmatpush.bf16.msra.mxu0 %v104
  %272 = vmatpush.bf16.msra.mxu0 %v91
  %273 = vmatmul.bf16.gmra.mxu0 %v132
  %v274 = vpop.f32.mrf.mxu0
  %v275 = vadd.f32 %v129, %v274
  %v276 = vpop.f32.mrf.mxu0
  %277 = vdwg.mxu0
  %278 = vmatpush.bf16.msra.mxu0 0
  %279 = vmatpush.bf16.msra.mxu0 0
  %280 = vmatpush.bf16.msra.mxu0 0
  %281 = vmatpush.bf16.msra.mxu0 0
  %282 = vmatpush.bf16.msra.mxu0 0
  %283 = vmatpush.bf16.msra.mxu0 %v160
  %284 = vmatpush.bf16.msra.mxu0 %v105
  %285 = vmatpush.bf16.msra.mxu0 %v92
  %286 = vmatmul.bf16.gmra.mxu0 %v132
  %v287 = vpop.f32.mrf.mxu0
  %v288 = vadd.f32 %v129, %v287
  %v289 = vpop.f32.mrf.mxu0
  %290 = vdwg.mxu0
  %291 = vmatpush.bf16.msra.mxu0 0
  %292 = vmatpush.bf16.msra.mxu0 0
  %293 = vmatpush.bf16.msra.mxu0 0
  %294 = vmatpush.bf16.msra.mxu0 0
  %295 = vmatpush.bf16.msra.mxu0 0
  %296 = vmatpush.bf16.msra.mxu0 %v163
  %297 = vmatpush.bf16.msra.mxu0 %v106
  %298 = vmatpush.bf16.msra.mxu0 %v93
  %299 = vmatmul.bf16.gmra.mxu0 %v132
  %v300 = vpop.f32.mrf.mxu0
  %v301 = vadd.f32 %v129, %v300
  %v302 = vpop.f32.mrf.mxu0
  %303 = vdwg.mxu0
  %304 = vmatpush.bf16.msra.mxu0 0
  %305 = vmatpush.bf16.msra.mxu0 0
  %306 = vmatpush.bf16.msra.mxu0 0
  %307 = vmatpush.bf16.msra.mxu0 0
  %308 = vmatpush.bf16.msra.mxu0 0
  %309 = vmatpush.bf16.msra.mxu0 %v166
  %310 = vmatpush.bf16.msra.mxu0 %v107
  %311 = vmatpush.bf16.msra.mxu0 %v94
  %312 = vmatmul.bf16.gmra.mxu0 %v132
  %v313 = vpop.f32.mrf.mxu0
  %v314 = vadd.f32 %v129, %v313
  %v315 = vpop.f32.mrf.mxu0
  %316 = vdwg.mxu0
  %317 = vmatpush.bf16.msra.mxu0 0
  %318 = vmatpush.bf16.msra.mxu0 0
  %319 = vmatpush.bf16.msra.mxu0 0
  %320 = vmatpush.bf16.msra.mxu0 0
  %321 = vmatpush.bf16.msra.mxu0 0
  %322 = vmatpush.bf16.msra.mxu0 %v169
  %323 = vmatpush.bf16.msra.mxu0 %v108
  %324 = vmatpush.bf16.msra.mxu0 %v95
  %325 = vmatmul.bf16.gmra.mxu0 %v132
  %v326 = vpop.f32.mrf.mxu0
  %v327 = vadd.f32 %v129, %v326
  %v328 = vpop.f32.mrf.mxu0
  %329 = vdwg.mxu0
  %330 = vmatpush.bf16.msra.mxu0 0
  %331 = vmatpush.bf16.msra.mxu0 0
  %332 = vmatpush.bf16.msra.mxu0 0
  %333 = vmatpush.bf16.msra.mxu0 0
  %334 = vmatpush.bf16.msra.mxu0 0
  %335 = vmatpush.bf16.msra.mxu0 %v172
  %336 = vmatpush.bf16.msra.mxu0 %v109
  %337 = vmatpush.bf16.msra.mxu0 %v96
  %338 = vmatmul.bf16.gmra.mxu0 %v132
  %v339 = vpop.f32.mrf.mxu0
  %v340 = vadd.f32 %v129, %v339
  %v341 = vpop.f32.mrf.mxu0
  %342 = vdwg.mxu0
  %v343 = vtanh.pop %v184
  %v344 = vtanh.pop %v197
  %v345 = vtanh.pop %v210
  %v346 = vtanh.pop %v223
  %v347 = vtanh.pop %v236
  %v348 = vtanh.pop %v249
  %v349 = vtanh.pop %v262
  %v350 = vtanh.pop %v275
  %v351 = vtanh.pop %v288
  %v352 = vtanh.pop %v301
  %v353 = vtanh.pop %v314
  %v354 = vtanh.pop %v327
  %v355 = vtanh.pop %v340
  %v369 = vrot.slane %v344, 7
  %v370 = vrot.slane %v345, 6
  %v371 = vrot.slane %v346, 5
  %v372 = vrot.slane %v347, 4
  %v373 = vrot.slane %v348, 3
  %v374 = vrot.slane %v349, 2
  %v375 = vrot.slane %v350, 1
  %v376 = vrot.slane %v352, 7
  %v377 = vrot.slane %v353, 6
  %v378 = vrot.slane %v354, 5
  %v379 = vrot.slane %v355, 4
  %vm380 = vcmask 1040384
  %v381 = vsel %vm380, %v343, %v369
  %vm382 = vcmask 1042434
  %v383 = vsel %vm382, %v370, %v371
  %v384 = vsel %vm134, %v381, %v383
  %vm385 = vcmask 1044484
  %v386 = vsel %vm385, %v372, %v373
  %vm387 = vcmask 1046534
  %v388 = vsel %vm387, %v374, %v375
  %vm389 = vcmask 1045508
  %v390 = vsel %vm389, %v386, %v388
  %vm391 = vcmask 1043456
  %v392 = vsel %vm391, %v384, %v390
  %v393 = vsel %vm380, %v351, %v376
  %v394 = vsel %vm134, %v393, %v377
  %vm395 = vcmask 1043459
  %v396 = vsel %vm395, %v378, %v379
  %vm397 = vcmask 1042432
  %v398 = vsel %vm397, %v394, %v396
  %401 = vst [vmem:[%s3] sm:$0xff] %v392
  %v402 = vlaneseq
  %vm403 = vcmp.ge.s32.totalorder %v402, 0
  %vm404 = vcmp.lt.s32.totalorder %v402, 544
  %vm405 = vmand %vm403, %vm404
  %406 = vst.msk [vmem:[%s3 + $0x8] sm:$0x1f] %vm405, %v398
  // Predicated region
  $region14: #{vae_forward.13} parent=0 // pred_check
    _
  $region15: #{vae_forward.13} parent=0 // pred_check_branch
    %408 = sbr.rel (0) target = $region17
  $region16: #{vae_forward.13} parent=0 // pred_region
    _
  $region17: #{vae_forward.13} parent=0 // pred_fallthru
    _
  // Predicated region
  $region18: #{vae_forward.13} parent=0 // pred_check
    _
  $region19: #{vae_forward.13} parent=0 // pred_check_branch
    %410 = sbr.rel (0) target = $region21
  $region20: #{vae_forward.13} parent=0 // pred_region
    _
  $region21: #{vae_forward.13} parent=0 // pred_fallthru
    _

</llo_original>
